<compile_context>
chip_gen: v7x
topology: tpu7x:2x2x1
jax: 0.10.0
libtpu: 0.0.40
codegen_flags: <defaults>
</compile_context>

<pallas_src>
import jax
import jax.numpy as jnp
import numpy as np
from jax.experimental import pallas as pl
from jax.experimental.pallas import tpu as pltpu


def _silu(x):
    return x * jax.nn.sigmoid(x)


# ----------------------------------------------------------------------------
# Fused kernel: one (n, h) grid step = one TH-row band of one image.
#
#   x_ref    : (1, H+4, W, C1)   whole 2-row zero-padded image (resident across h)
#   w1_ref   : (C1, C)           cv1 weight with BN scale folded in
#   b1_ref   : (1, C)            cv1 folded BN bias
#   w2_ref   : (25, C)           cv2 depthwise taps (dh*5+dw, c), BN scale folded
#   b2_ref   : (1, C)            cv2 folded BN bias
#   o_ref    : (1, TH, W, 2*C)   concat([y, y2], channel axis) for this band
#   ypad_ref : (TH+4, Wpad, C)   VMEM band scratch with 2-col zero halo
# ----------------------------------------------------------------------------
def _ghost_kernel(x_ref, w1_ref, b1_ref, w2_ref, b2_ref, o_ref, ypad_ref):
    _, TH, W, C2 = o_ref.shape
    C = C2 // 2
    THp4, Wpad, _ = ypad_ref.shape
    C1 = x_ref.shape[-1]
    H = pl.num_programs(1) * TH                     # original image height

    h = pl.program_id(1)
    r0 = pl.multiple_of(h * TH, TH)                 # band start (original rows)

    # ---- cv1: pointwise conv (MXU) on band + 2-row halo, bias + SiLU --------
    # Padded-x row r0 corresponds to original row r0 - 2, so this window covers
    # original rows [r0-2, r0+TH+2) and is always in bounds of the padded image.
    xb = x_ref[0, pl.ds(r0, THp4), :, :]            # (TH+4, W, C1)
    x2d = xb.reshape(THp4 * W, C1)
    y2d = jnp.dot(x2d, w1_ref[...], preferred_element_type=jnp.float32)
    y2d = _silu(y2d + b1_ref[...])                  # (TH+4*W, C) f32
    yb = y2d.reshape(THp4, W, C)

    # Zero the halo rows that lie outside the image: cv2 uses 'same' zero padding
    # of y, and cv1 of a zero x row is SiLU(b1) != 0, so mask it out explicitly.
    rows = jax.lax.broadcasted_iota(jnp.int32, (THp4, 1, 1), 0) + (r0 - 2)
    yb = jnp.where((rows >= 0) & (rows < H), yb, 0.0)

    # ---- stage band into the column-padded scratch ---------------------------
    # Only the column halo strips need zeroing (all TH+4 rows are overwritten
    # every step); the right strip [W+2, Wpad) also keeps the sublane rolls safe.
    ypad_ref[:, :2, :] = jnp.zeros((THp4, 2, C), ypad_ref.dtype)
    ypad_ref[:, 2 + W:, :] = jnp.zeros((THp4, Wpad - W - 2, C), ypad_ref.dtype)
    ypad_ref[:, 2:2 + W, :] = yb.astype(ypad_ref.dtype)

    # ---- cv2: depthwise 5x5, 4 sublane rolls + major-dim slices --------------
    w2 = w2_ref[...]                                # (25, C) hoisted out of loop
    b2 = b2_ref[...]                                # (1, C)
    slab = ypad_ref[...]                            # (TH+4, Wpad, C)
    # rolled[dw][r, c] = slab[r, c + dw]  for the kept columns c < W (no wrap).
    rolled = [slab] + [pltpu.roll(slab, shift=Wpad - dw, axis=1) for dw in range(1, 5)]

    # Fold the cv2 bias into the accumulator init (one full-slab add removed).
    acc = jnp.broadcast_to(b2.reshape(1, 1, C).astype(jnp.float32), (TH, Wpad, C))
    for dh in range(5):
        for dw in range(5):
            acc = acc + rolled[dw][dh:dh + TH] * w2[dh * 5 + dw]
    y2 = _silu(acc[:, :W, :])                       # (TH, W, C) f32

    # ---- single store of concat([y, y2]) for this band ----------------------
    y_keep = yb[2:2 + TH]                           # intrinsic half (valid rows)
    out_band = jnp.concatenate([y_keep, y2], axis=-1)   # (TH, W, 2C)
    o_ref[0] = out_band.astype(o_ref.dtype)


def _pick_band_rows(H, target):
    """Largest divisor of H that is <= target (so the H grid axis tiles exactly)."""
    th = max(1, min(int(target), int(H)))
    while H % th:
        th -= 1
    return th


# ----------------------------------------------------------------------------
# GhostConv wrapper: layout glue + BN folding + the fused pallas_call.
# ----------------------------------------------------------------------------
def ghost_conv(x_nchw, params, band_rows=8):
    N, C1, H, W = x_nchw.shape
    C = params["w1"].shape[1]                 # c_ = c2 // 2
    TH = _pick_band_rows(H, band_rows)
    nH = H // TH
    Wpad = ((W + 4 + 7) // 8) * 8             # sublane-aligned padded band width

    dt = x_nchw.dtype
    # NCHW -> NHWC (channels on the lane axis) + 2-row zero halo for the band slices.
    # TODO(synk): keep the surrounding model NHWC to drop these transposes.
    x = jnp.transpose(x_nchw, (0, 2, 3, 1))
    xp = jnp.pad(x, ((0, 0), (2, 2), (0, 0), (0, 0)))          # (N, H+4, W, C1)

    # Fold BN scale into the conv weights; keep only the bias adds in-kernel.
    w1f = (params["w1"] * params["s1"][None, :]).astype(dt)                  # (C1, C)
    w2f = (params["w2"] * params["s2"][None, None, :]).reshape(25, C)
    w2f = w2f.astype(jnp.float32)             # small; keeps the f32 accumulate exact
    b1 = params["b1"].reshape(1, C).astype(jnp.float32)
    b2 = params["b2"].reshape(1, C).astype(jnp.float32)

    # Per-generation VMEM budget with headroom (v7x has only 64 MiB per TC).
    try:
        vmem_cap = int(pltpu.get_tpu_info().vmem_capacity_bytes)
    except Exception:
        vmem_cap = 128 * 1024 * 1024
    vmem_limit = int(min(vmem_cap * 3 // 4, 100 * 1024 * 1024))

    out_nhwc = pl.pallas_call(
        _ghost_kernel,
        out_shape=jax.ShapeDtypeStruct((N, H, W, 2 * C), dt),
        grid_spec=pltpu.PrefetchScalarGridSpec(
            num_scalar_prefetch=0,
            grid=(N, nH),
            in_specs=[
                # Whole padded image; index_map ignores h so it is DMA'd once per n.
                pl.BlockSpec((1, H + 4, W, C1), lambda n, h: (n, 0, 0, 0)),
                pl.BlockSpec((C1, C), lambda n, h: (0, 0)),
                pl.BlockSpec((1, C), lambda n, h: (0, 0)),
                pl.BlockSpec((25, C), lambda n, h: (0, 0)),
                pl.BlockSpec((1, C), lambda n, h: (0, 0)),
            ],
            out_specs=pl.BlockSpec((1, TH, W, 2 * C), lambda n, h: (n, h, 0, 0)),
            scratch_shapes=[pltpu.VMEM((TH + 4, Wpad, C), dt)],
        ),
        compiler_params=pltpu.CompilerParams(
            dimension_semantics=("parallel", "parallel"),
            vmem_limit_bytes=vmem_limit,
        ),
    )(xp, w1f, b1, w2f, b2)

    return jnp.transpose(out_nhwc, (0, 3, 1, 2))      # NHWC -> NCHW (interface)


# ----------------------------------------------------------------------------
# Pure-JAX reference (for correctness check)
# ----------------------------------------------------------------------------
def ghost_conv_ref(x_nchw, params):
    x = jnp.transpose(x_nchw, (0, 2, 3, 1)).astype(jnp.float32)
    C_ = params["w1"].shape[1]
    y = jnp.einsum("nhwc,cd->nhwd", x, params["w1"]) * params["s1"] + params["b1"]
    y = _silu(y)
    w2 = params["w2"][:, :, None, :]                   # HWIO, I=1 (depthwise)
    y2 = jax.lax.conv_general_dilated(
        y, w2, window_strides=(1, 1), padding="SAME",
        dimension_numbers=("NHWC", "HWIO", "NHWC"), feature_group_count=C_)
    y2 = _silu(y2 * params["s2"] + params["b2"])
    out = jnp.concatenate([y, y2], axis=-1)
    return jnp.transpose(out, (0, 3, 1, 2))


def make_params(key, c1, c2):
    """Deterministic synthetic parameters (shapes match the PyTorch module)."""
    c_ = c2 // 2
    eps = 1e-5
    ks = jax.random.split(key, 10)
    # cv1.conv.weight: (c_, c1, 1, 1) -> (c1, c_)
    w1 = jax.random.normal(ks[0], (c1, c_), jnp.float32) * 0.3
    g1 = 1.0 + 0.1 * jax.random.normal(ks[1], (c_,), jnp.float32)
    beta1 = 0.1 * jax.random.normal(ks[2], (c_,), jnp.float32)
    m1 = 0.1 * jax.random.normal(ks[3], (c_,), jnp.float32)
    v1 = jnp.abs(jax.random.normal(ks[4], (c_,), jnp.float32)) + 0.5
    s1 = g1 / jnp.sqrt(v1 + eps)
    b1 = beta1 - m1 * s1
    # cv2.conv.weight: (c_, 1, 5, 5) depthwise -> (5, 5, c_)
    w2 = jax.random.normal(ks[5], (5, 5, c_), jnp.float32) * 0.1
    g2 = 1.0 + 0.1 * jax.random.normal(ks[6], (c_,), jnp.float32)
    beta2 = 0.1 * jax.random.normal(ks[7], (c_,), jnp.float32)
    m2 = 0.1 * jax.random.normal(ks[8], (c_,), jnp.float32)
    v2 = jnp.abs(jax.random.normal(ks[9], (c_,), jnp.float32)) + 0.5
    s2 = g2 / jnp.sqrt(v2 + eps)
    b2 = beta2 - m2 * s2
    return {"w1": w1, "s1": s1, "b1": b1, "w2": w2, "s2": s2, "b2": b2}


if __name__ == "__main__":
    key = jax.random.PRNGKey(0)
    kx, kp = jax.random.split(key)

    N, C1, H, W = 2, 4, 16, 16
    C2 = 8  # -> c_ = 4, output channels = 8
    x = jax.random.normal(kx, (N, C1, H, W), jnp.float32)
    params = make_params(kp, C1, C2)

    out = jax.block_until_ready(ghost_conv(x, params, band_rows=8))
    ref = jax.block_until_ready(ghost_conv_ref(x, params))

    assert out.shape == (N, C2, H, W), out.shape
    np.testing.assert_allclose(np.asarray(out), np.asarray(ref), rtol=1e-3, atol=1e-3)
    print("KERNEL_OK")
</pallas_src>

<mosaic_0001>
module attributes {stable_mosaic.version = 11 : i64} {
  func.func @_ghost_kernel(%arg0: i32, %arg1: i32, %arg2: memref<1x20x16x4xf32, #tpu.memory_space<vmem>>, %arg3: memref<4x4xf32, #tpu.memory_space<vmem>>, %arg4: memref<1x4xf32, #tpu.memory_space<vmem>>, %arg5: memref<25x4xf32, #tpu.memory_space<vmem>>, %arg6: memref<1x4xf32, #tpu.memory_space<vmem>>, %arg7: memref<1x8x16x8xf32, #tpu.memory_space<vmem>>, %arg8: memref<12x24x4xf32, #tpu.memory_space<vmem>>) attributes {dimension_semantics = [#tpu.dimension_semantics<parallel>, #tpu.dimension_semantics<parallel>], iteration_bounds = array<i64: 2, 2>, scalar_prefetch = 0 : i64, scratch_operands = 1 : i64, tpu.core_type = #tpu.core_type<tc>, window_params = [{transform_indices = @transform_0, window_bounds = array<i64: 1, 20, 16, 4>}, {pipeline_mode = #tpu.pipeline_mode<synchronous>, transform_indices = @transform_1, window_bounds = array<i64: 4, 4>}, {pipeline_mode = #tpu.pipeline_mode<synchronous>, transform_indices = @transform_2, window_bounds = array<i64: 1, 4>}, {pipeline_mode = #tpu.pipeline_mode<synchronous>, transform_indices = @transform_3, window_bounds = array<i64: 25, 4>}, {pipeline_mode = #tpu.pipeline_mode<synchronous>, transform_indices = @transform_4, window_bounds = array<i64: 1, 4>}, {transform_indices = @transform_5, window_bounds = array<i64: 1, 8, 16, 8>}]} {
    %c8_i32 = arith.constant 8 : i32
    %0 = arith.muli %arg1, %c8_i32 : i32
    %1 = tpu.assume_multiple %0, 8 : i32
    %c0 = arith.constant 0 : index
    %2 = arith.index_cast %1 : i32 to index
    %c0_0 = arith.constant 0 : index
    %c0_1 = arith.constant 0 : index
    %3 = vector.load %arg2[%c0, %2, %c0_0, %c0_1] : memref<1x20x16x4xf32, #tpu.memory_space<vmem>>, vector<1x12x16x4xf32>
    %4 = vector.shape_cast %3 : vector<1x12x16x4xf32> to vector<12x16x4xf32>
    %5 = vector.shape_cast %4 : vector<12x16x4xf32> to vector<192x4xf32>
    %c0_2 = arith.constant 0 : index
    %c0_3 = arith.constant 0 : index
    %6 = vector.load %arg3[%c0_2, %c0_3] : memref<4x4xf32, #tpu.memory_space<vmem>>, vector<4x4xf32>
    %cst = arith.constant dense<0.000000e+00> : vector<192x4xf32>
    %7 = tpu.matmul %5, %6, %cst {dimension_numbers = #tpu.dot_dimension_numbers<[1], [0], [0], [1], [0, 0, 1, 1], [], []>} : vector<192x4xf32>, vector<4x4xf32>, vector<192x4xf32> -> vector<192x4xf32>
    %c0_4 = arith.constant 0 : index
    %c0_5 = arith.constant 0 : index
    %8 = vector.load %arg4[%c0_4, %c0_5] : memref<1x4xf32, #tpu.memory_space<vmem>>, vector<1x4xf32>
    %9 = vector.broadcast %8 : vector<1x4xf32> to vector<192x4xf32>
    %10 = arith.addf %7, %9 : vector<192x4xf32>
    %11 = arith.negf %10 : vector<192x4xf32>
    %12 = math.exp %11 : vector<192x4xf32>
    %cst_6 = arith.constant 1.000000e+00 : f32
    %13 = vector.broadcast %cst_6 : f32 to vector<192x4xf32>
    %14 = arith.addf %13, %12 : vector<192x4xf32>
    %15 = arith.divf %13, %14 : vector<192x4xf32>
    %16 = arith.mulf %10, %15 : vector<192x4xf32>
    %17 = vector.shape_cast %16 : vector<192x4xf32> to vector<12x16x4xf32>
    %18 = tpu.iota {dimensions = array<i32: 0>} : vector<12x1x1xi32>
    %c2_i32 = arith.constant 2 : i32
    %19 = arith.subi %1, %c2_i32 : i32
    %20 = vector.broadcast %19 : i32 to vector<12x1x1xi32>
    %21 = arith.addi %18, %20 : vector<12x1x1xi32>
    %c0_i32 = arith.constant 0 : i32
    %22 = vector.broadcast %c0_i32 : i32 to vector<12x1x1xi32>
    %23 = arith.cmpi sge, %21, %22 : vector<12x1x1xi32>
    %c16_i32 = arith.constant 16 : i32
    %24 = vector.broadcast %c16_i32 : i32 to vector<12x1x1xi32>
    %25 = arith.cmpi slt, %21, %24 : vector<12x1x1xi32>
    %26 = arith.andi %23, %25 : vector<12x1x1xi1>
    %cst_7 = arith.constant 0.000000e+00 : f32
    %27 = vector.shape_cast %26 : vector<12x1x1xi1> to vector<12x1x1xi1>
    %28 = vector.broadcast %27 : vector<12x1x1xi1> to vector<12x16x4xi1>
    %29 = vector.broadcast %cst_7 : f32 to vector<12x16x4xf32>
    %30 = arith.select %28, %17, %29 : vector<12x16x4xi1>, vector<12x16x4xf32>
    %cst_8 = arith.constant 0.000000e+00 : f32
    %31 = vector.broadcast %cst_8 : f32 to vector<12x2x4xf32>
    %c0_9 = arith.constant 0 : index
    %c0_10 = arith.constant 0 : index
    %c0_11 = arith.constant 0 : index
    %32 = vector.load %arg8[%c0_9, %c0_10, %c0_11] : memref<12x24x4xf32, #tpu.memory_space<vmem>>, vector<12x2x4xf32>
    tpu.vector_store %arg8[%c0_9, %c0_10, %c0_11], %31 {strides = array<i32>} : memref<12x24x4xf32, #tpu.memory_space<vmem>>, vector<12x2x4xf32>,
    %cst_12 = arith.constant 0.000000e+00 : f32
    %33 = vector.broadcast %cst_12 : f32 to vector<12x6x4xf32>
    %c0_13 = arith.constant 0 : index
    %c18 = arith.constant 18 : index
    %c0_14 = arith.constant 0 : index
    %34 = vector.load %arg8[%c0_13, %c18, %c0_14] : memref<12x24x4xf32, #tpu.memory_space<vmem>>, vector<12x6x4xf32>
    tpu.vector_store %arg8[%c0_13, %c18, %c0_14], %33 {strides = array<i32>} : memref<12x24x4xf32, #tpu.memory_space<vmem>>, vector<12x6x4xf32>,
    %c0_15 = arith.constant 0 : index
    %c2 = arith.constant 2 : index
    %c0_16 = arith.constant 0 : index
    %35 = vector.load %arg8[%c0_15, %c2, %c0_16] : memref<12x24x4xf32, #tpu.memory_space<vmem>>, vector<12x16x4xf32>
    tpu.vector_store %arg8[%c0_15, %c2, %c0_16], %30 {strides = array<i32>} : memref<12x24x4xf32, #tpu.memory_space<vmem>>, vector<12x16x4xf32>,
    %c0_17 = arith.constant 0 : index
    %c0_18 = arith.constant 0 : index
    %36 = vector.load %arg5[%c0_17, %c0_18] : memref<25x4xf32, #tpu.memory_space<vmem>>, vector<25x4xf32>
    %c0_19 = arith.constant 0 : index
    %c0_20 = arith.constant 0 : index
    %37 = vector.load %arg6[%c0_19, %c0_20] : memref<1x4xf32, #tpu.memory_space<vmem>>, vector<1x4xf32>
    %c0_21 = arith.constant 0 : index
    %c0_22 = arith.constant 0 : index
    %c0_23 = arith.constant 0 : index
    %38 = vector.load %arg8[%c0_21, %c0_22, %c0_23] : memref<12x24x4xf32, #tpu.memory_space<vmem>>, vector<12x24x4xf32>
    %c23_i32 = arith.constant 23 : i32
    %39 = tpu.dynamic_rotate %38 by %c23_i32 dim 1 : vector<12x24x4xf32>, i32 -> vector<12x24x4xf32>
    %c22_i32 = arith.constant 22 : i32
    %40 = tpu.dynamic_rotate %38 by %c22_i32 dim 1 : vector<12x24x4xf32>, i32 -> vector<12x24x4xf32>
    %c21_i32 = arith.constant 21 : i32
    %41 = tpu.dynamic_rotate %38 by %c21_i32 dim 1 : vector<12x24x4xf32>, i32 -> vector<12x24x4xf32>
    %c20_i32 = arith.constant 20 : i32
    %42 = tpu.dynamic_rotate %38 by %c20_i32 dim 1 : vector<12x24x4xf32>, i32 -> vector<12x24x4xf32>
    %43 = vector.shape_cast %37 : vector<1x4xf32> to vector<1x1x4xf32>
    %44 = vector.shape_cast %43 : vector<1x1x4xf32> to vector<1x1x4xf32>
    %45 = vector.broadcast %44 : vector<1x1x4xf32> to vector<8x24x4xf32>
    %46 = vector.extract_strided_slice %38 {offsets = [0, 0, 0], sizes = [8, 24, 4], strides = [1, 1, 1]} : vector<12x24x4xf32> to vector<8x24x4xf32>
    %47 = vector.extract_strided_slice %36 {offsets = [0, 0], sizes = [1, 4], strides = [1, 1]} : vector<25x4xf32> to vector<1x4xf32>
    %48 = vector.shape_cast %47 : vector<1x4xf32> to vector<4xf32>
    %49 = vector.shape_cast %48 : vector<4xf32> to vector<1x1x4xf32>
    %50 = vector.broadcast %49 : vector<1x1x4xf32> to vector<8x24x4xf32>
    %51 = arith.mulf %46, %50 : vector<8x24x4xf32>
    %52 = arith.addf %45, %51 : vector<8x24x4xf32>
    %53 = vector.extract_strided_slice %39 {offsets = [0, 0, 0], sizes = [8, 24, 4], strides = [1, 1, 1]} : vector<12x24x4xf32> to vector<8x24x4xf32>
    %54 = vector.extract_strided_slice %36 {offsets = [1, 0], sizes = [1, 4], strides = [1, 1]} : vector<25x4xf32> to vector<1x4xf32>
    %55 = vector.shape_cast %54 : vector<1x4xf32> to vector<4xf32>
    %56 = vector.shape_cast %55 : vector<4xf32> to vector<1x1x4xf32>
    %57 = vector.broadcast %56 : vector<1x1x4xf32> to vector<8x24x4xf32>
    %58 = arith.mulf %53, %57 : vector<8x24x4xf32>
    %59 = arith.addf %52, %58 : vector<8x24x4xf32>
    %60 = vector.extract_strided_slice %40 {offsets = [0, 0, 0], sizes = [8, 24, 4], strides = [1, 1, 1]} : vector<12x24x4xf32> to vector<8x24x4xf32>
    %61 = vector.extract_strided_slice %36 {offsets = [2, 0], sizes = [1, 4], strides = [1, 1]} : vector<25x4xf32> to vector<1x4xf32>
    %62 = vector.shape_cast %61 : vector<1x4xf32> to vector<4xf32>
    %63 = vector.shape_cast %62 : vector<4xf32> to vector<1x1x4xf32>
    %64 = vector.broadcast %63 : vector<1x1x4xf32> to vector<8x24x4xf32>
    %65 = arith.mulf %60, %64 : vector<8x24x4xf32>
    %66 = arith.addf %59, %65 : vector<8x24x4xf32>
    %67 = vector.extract_strided_slice %41 {offsets = [0, 0, 0], sizes = [8, 24, 4], strides = [1, 1, 1]} : vector<12x24x4xf32> to vector<8x24x4xf32>
    %68 = vector.extract_strided_slice %36 {offsets = [3, 0], sizes = [1, 4], strides = [1, 1]} : vector<25x4xf32> to vector<1x4xf32>
    %69 = vector.shape_cast %68 : vector<1x4xf32> to vector<4xf32>
    %70 = vector.shape_cast %69 : vector<4xf32> to vector<1x1x4xf32>
    %71 = vector.broadcast %70 : vector<1x1x4xf32> to vector<8x24x4xf32>
    %72 = arith.mulf %67, %71 : vector<8x24x4xf32>
    %73 = arith.addf %66, %72 : vector<8x24x4xf32>
    %74 = vector.extract_strided_slice %42 {offsets = [0, 0, 0], sizes = [8, 24, 4], strides = [1, 1, 1]} : vector<12x24x4xf32> to vector<8x24x4xf32>
    %75 = vector.extract_strided_slice %36 {offsets = [4, 0], sizes = [1, 4], strides = [1, 1]} : vector<25x4xf32> to vector<1x4xf32>
    %76 = vector.shape_cast %75 : vector<1x4xf32> to vector<4xf32>
    %77 = vector.shape_cast %76 : vector<4xf32> to vector<1x1x4xf32>
    %78 = vector.broadcast %77 : vector<1x1x4xf32> to vector<8x24x4xf32>
    %79 = arith.mulf %74, %78 : vector<8x24x4xf32>
    %80 = arith.addf %73, %79 : vector<8x24x4xf32>
    %81 = vector.extract_strided_slice %38 {offsets = [1, 0, 0], sizes = [8, 24, 4], strides = [1, 1, 1]} : vector<12x24x4xf32> to vector<8x24x4xf32>
    %82 = vector.extract_strided_slice %36 {offsets = [5, 0], sizes = [1, 4], strides = [1, 1]} : vector<25x4xf32> to vector<1x4xf32>
    %83 = vector.shape_cast %82 : vector<1x4xf32> to vector<4xf32>
    %84 = vector.shape_cast %83 : vector<4xf32> to vector<1x1x4xf32>
    %85 = vector.broadcast %84 : vector<1x1x4xf32> to vector<8x24x4xf32>
    %86 = arith.mulf %81, %85 : vector<8x24x4xf32>
    %87 = arith.addf %80, %86 : vector<8x24x4xf32>
    %88 = vector.extract_strided_slice %39 {offsets = [1, 0, 0], sizes = [8, 24, 4], strides = [1, 1, 1]} : vector<12x24x4xf32> to vector<8x24x4xf32>
    %89 = vector.extract_strided_slice %36 {offsets = [6, 0], sizes = [1, 4], strides = [1, 1]} : vector<25x4xf32> to vector<1x4xf32>
    %90 = vector.shape_cast %89 : vector<1x4xf32> to vector<4xf32>
    %91 = vector.shape_cast %90 : vector<4xf32> to vector<1x1x4xf32>
    %92 = vector.broadcast %91 : vector<1x1x4xf32> to vector<8x24x4xf32>
    %93 = arith.mulf %88, %92 : vector<8x24x4xf32>
    %94 = arith.addf %87, %93 : vector<8x24x4xf32>
    %95 = vector.extract_strided_slice %40 {offsets = [1, 0, 0], sizes = [8, 24, 4], strides = [1, 1, 1]} : vector<12x24x4xf32> to vector<8x24x4xf32>
    %96 = vector.extract_strided_slice %36 {offsets = [7, 0], sizes = [1, 4], strides = [1, 1]} : vector<25x4xf32> to vector<1x4xf32>
    %97 = vector.shape_cast %96 : vector<1x4xf32> to vector<4xf32>
    %98 = vector.shape_cast %97 : vector<4xf32> to vector<1x1x4xf32>
    %99 = vector.broadcast %98 : vector<1x1x4xf32> to vector<8x24x4xf32>
    %100 = arith.mulf %95, %99 : vector<8x24x4xf32>
    %101 = arith.addf %94, %100 : vector<8x24x4xf32>
    %102 = vector.extract_strided_slice %41 {offsets = [1, 0, 0], sizes = [8, 24, 4], strides = [1, 1, 1]} : vector<12x24x4xf32> to vector<8x24x4xf32>
    %103 = vector.extract_strided_slice %36 {offsets = [8, 0], sizes = [1, 4], strides = [1, 1]} : vector<25x4xf32> to vector<1x4xf32>
    %104 = vector.shape_cast %103 : vector<1x4xf32> to vector<4xf32>
    %105 = vector.shape_cast %104 : vector<4xf32> to vector<1x1x4xf32>
    %106 = vector.broadcast %105 : vector<1x1x4xf32> to vector<8x24x4xf32>
    %107 = arith.mulf %102, %106 : vector<8x24x4xf32>
    %108 = arith.addf %101, %107 : vector<8x24x4xf32>
    %109 = vector.extract_strided_slice %42 {offsets = [1, 0, 0], sizes = [8, 24, 4], strides = [1, 1, 1]} : vector<12x24x4xf32> to vector<8x24x4xf32>
    %110 = vector.extract_strided_slice %36 {offsets = [9, 0], sizes = [1, 4], strides = [1, 1]} : vector<25x4xf32> to vector<1x4xf32>
    %111 = vector.shape_cast %110 : vector<1x4xf32> to vector<4xf32>
    %112 = vector.shape_cast %111 : vector<4xf32> to vector<1x1x4xf32>
    %113 = vector.broadcast %112 : vector<1x1x4xf32> to vector<8x24x4xf32>
    %114 = arith.mulf %109, %113 : vector<8x24x4xf32>
    %115 = arith.addf %108, %114 : vector<8x24x4xf32>
    %116 = vector.extract_strided_slice %38 {offsets = [2, 0, 0], sizes = [8, 24, 4], strides = [1, 1, 1]} : vector<12x24x4xf32> to vector<8x24x4xf32>
    %117 = vector.extract_strided_slice %36 {offsets = [10, 0], sizes = [1, 4], strides = [1, 1]} : vector<25x4xf32> to vector<1x4xf32>
    %118 = vector.shape_cast %117 : vector<1x4xf32> to vector<4xf32>
    %119 = vector.shape_cast %118 : vector<4xf32> to vector<1x1x4xf32>
    %120 = vector.broadcast %119 : vector<1x1x4xf32> to vector<8x24x4xf32>
    %121 = arith.mulf %116, %120 : vector<8x24x4xf32>
    %122 = arith.addf %115, %121 : vector<8x24x4xf32>
    %123 = vector.extract_strided_slice %39 {offsets = [2, 0, 0], sizes = [8, 24, 4], strides = [1, 1, 1]} : vector<12x24x4xf32> to vector<8x24x4xf32>
    %124 = vector.extract_strided_slice %36 {offsets = [11, 0], sizes = [1, 4], strides = [1, 1]} : vector<25x4xf32> to vector<1x4xf32>
    %125 = vector.shape_cast %124 : vector<1x4xf32> to vector<4xf32>
    %126 = vector.shape_cast %125 : vector<4xf32> to vector<1x1x4xf32>
    %127 = vector.broadcast %126 : vector<1x1x4xf32> to vector<8x24x4xf32>
    %128 = arith.mulf %123, %127 : vector<8x24x4xf32>
    %129 = arith.addf %122, %128 : vector<8x24x4xf32>
    %130 = vector.extract_strided_slice %40 {offsets = [2, 0, 0], sizes = [8, 24, 4], strides = [1, 1, 1]} : vector<12x24x4xf32> to vector<8x24x4xf32>
    %131 = vector.extract_strided_slice %36 {offsets = [12, 0], sizes = [1, 4], strides = [1, 1]} : vector<25x4xf32> to vector<1x4xf32>
    %132 = vector.shape_cast %131 : vector<1x4xf32> to vector<4xf32>
    %133 = vector.shape_cast %132 : vector<4xf32> to vector<1x1x4xf32>
    %134 = vector.broadcast %133 : vector<1x1x4xf32> to vector<8x24x4xf32>
    %135 = arith.mulf %130, %134 : vector<8x24x4xf32>
    %136 = arith.addf %129, %135 : vector<8x24x4xf32>
    %137 = vector.extract_strided_slice %41 {offsets = [2, 0, 0], sizes = [8, 24, 4], strides = [1, 1, 1]} : vector<12x24x4xf32> to vector<8x24x4xf32>
    %138 = vector.extract_strided_slice %36 {offsets = [13, 0], sizes = [1, 4], strides = [1, 1]} : vector<25x4xf32> to vector<1x4xf32>
    %139 = vector.shape_cast %138 : vector<1x4xf32> to vector<4xf32>
    %140 = vector.shape_cast %139 : vector<4xf32> to vector<1x1x4xf32>
    %141 = vector.broadcast %140 : vector<1x1x4xf32> to vector<8x24x4xf32>
    %142 = arith.mulf %137, %141 : vector<8x24x4xf32>
    %143 = arith.addf %136, %142 : vector<8x24x4xf32>
    %144 = vector.extract_strided_slice %42 {offsets = [2, 0, 0], sizes = [8, 24, 4], strides = [1, 1, 1]} : vector<12x24x4xf32> to vector<8x24x4xf32>
    %145 = vector.extract_strided_slice %36 {offsets = [14, 0], sizes = [1, 4], strides = [1, 1]} : vector<25x4xf32> to vector<1x4xf32>
    %146 = vector.shape_cast %145 : vector<1x4xf32> to vector<4xf32>
    %147 = vector.shape_cast %146 : vector<4xf32> to vector<1x1x4xf32>
    %148 = vector.broadcast %147 : vector<1x1x4xf32> to vector<8x24x4xf32>
    %149 = arith.mulf %144, %148 : vector<8x24x4xf32>
    %150 = arith.addf %143, %149 : vector<8x24x4xf32>
    %151 = vector.extract_strided_slice %38 {offsets = [3, 0, 0], sizes = [8, 24, 4], strides = [1, 1, 1]} : vector<12x24x4xf32> to vector<8x24x4xf32>
    %152 = vector.extract_strided_slice %36 {offsets = [15, 0], sizes = [1, 4], strides = [1, 1]} : vector<25x4xf32> to vector<1x4xf32>
    %153 = vector.shape_cast %152 : vector<1x4xf32> to vector<4xf32>
    %154 = vector.shape_cast %153 : vector<4xf32> to vector<1x1x4xf32>
    %155 = vector.broadcast %154 : vector<1x1x4xf32> to vector<8x24x4xf32>
    %156 = arith.mulf %151, %155 : vector<8x24x4xf32>
    %157 = arith.addf %150, %156 : vector<8x24x4xf32>
    %158 = vector.extract_strided_slice %39 {offsets = [3, 0, 0], sizes = [8, 24, 4], strides = [1, 1, 1]} : vector<12x24x4xf32> to vector<8x24x4xf32>
    %159 = vector.extract_strided_slice %36 {offsets = [16, 0], sizes = [1, 4], strides = [1, 1]} : vector<25x4xf32> to vector<1x4xf32>
    %160 = vector.shape_cast %159 : vector<1x4xf32> to vector<4xf32>
    %161 = vector.shape_cast %160 : vector<4xf32> to vector<1x1x4xf32>
    %162 = vector.broadcast %161 : vector<1x1x4xf32> to vector<8x24x4xf32>
    %163 = arith.mulf %158, %162 : vector<8x24x4xf32>
    %164 = arith.addf %157, %163 : vector<8x24x4xf32>
    %165 = vector.extract_strided_slice %40 {offsets = [3, 0, 0], sizes = [8, 24, 4], strides = [1, 1, 1]} : vector<12x24x4xf32> to vector<8x24x4xf32>
    %166 = vector.extract_strided_slice %36 {offsets = [17, 0], sizes = [1, 4], strides = [1, 1]} : vector<25x4xf32> to vector<1x4xf32>
    %167 = vector.shape_cast %166 : vector<1x4xf32> to vector<4xf32>
    %168 = vector.shape_cast %167 : vector<4xf32> to vector<1x1x4xf32>
    %169 = vector.broadcast %168 : vector<1x1x4xf32> to vector<8x24x4xf32>
    %170 = arith.mulf %165, %169 : vector<8x24x4xf32>
    %171 = arith.addf %164, %170 : vector<8x24x4xf32>
    %172 = vector.extract_strided_slice %41 {offsets = [3, 0, 0], sizes = [8, 24, 4], strides = [1, 1, 1]} : vector<12x24x4xf32> to vector<8x24x4xf32>
    %173 = vector.extract_strided_slice %36 {offsets = [18, 0], sizes = [1, 4], strides = [1, 1]} : vector<25x4xf32> to vector<1x4xf32>
    %174 = vector.shape_cast %173 : vector<1x4xf32> to vector<4xf32>
    %175 = vector.shape_cast %174 : vector<4xf32> to vector<1x1x4xf32>
    %176 = vector.broadcast %175 : vector<1x1x4xf32> to vector<8x24x4xf32>
    %177 = arith.mulf %172, %176 : vector<8x24x4xf32>
    %178 = arith.addf %171, %177 : vector<8x24x4xf32>
    %179 = vector.extract_strided_slice %42 {offsets = [3, 0, 0], sizes = [8, 24, 4], strides = [1, 1, 1]} : vector<12x24x4xf32> to vector<8x24x4xf32>
    %180 = vector.extract_strided_slice %36 {offsets = [19, 0], sizes = [1, 4], strides = [1, 1]} : vector<25x4xf32> to vector<1x4xf32>
    %181 = vector.shape_cast %180 : vector<1x4xf32> to vector<4xf32>
    %182 = vector.shape_cast %181 : vector<4xf32> to vector<1x1x4xf32>
    %183 = vector.broadcast %182 : vector<1x1x4xf32> to vector<8x24x4xf32>
    %184 = arith.mulf %179, %183 : vector<8x24x4xf32>
    %185 = arith.addf %178, %184 : vector<8x24x4xf32>
    %186 = vector.extract_strided_slice %38 {offsets = [4, 0, 0], sizes = [8, 24, 4], strides = [1, 1, 1]} : vector<12x24x4xf32> to vector<8x24x4xf32>
    %187 = vector.extract_strided_slice %36 {offsets = [20, 0], sizes = [1, 4], strides = [1, 1]} : vector<25x4xf32> to vector<1x4xf32>
    %188 = vector.shape_cast %187 : vector<1x4xf32> to vector<4xf32>
    %189 = vector.shape_cast %188 : vector<4xf32> to vector<1x1x4xf32>
    %190 = vector.broadcast %189 : vector<1x1x4xf32> to vector<8x24x4xf32>
    %191 = arith.mulf %186, %190 : vector<8x24x4xf32>
    %192 = arith.addf %185, %191 : vector<8x24x4xf32>
    %193 = vector.extract_strided_slice %39 {offsets = [4, 0, 0], sizes = [8, 24, 4], strides = [1, 1, 1]} : vector<12x24x4xf32> to vector<8x24x4xf32>
    %194 = vector.extract_strided_slice %36 {offsets = [21, 0], sizes = [1, 4], strides = [1, 1]} : vector<25x4xf32> to vector<1x4xf32>
    %195 = vector.shape_cast %194 : vector<1x4xf32> to vector<4xf32>
    %196 = vector.shape_cast %195 : vector<4xf32> to vector<1x1x4xf32>
    %197 = vector.broadcast %196 : vector<1x1x4xf32> to vector<8x24x4xf32>
    %198 = arith.mulf %193, %197 : vector<8x24x4xf32>
    %199 = arith.addf %192, %198 : vector<8x24x4xf32>
    %200 = vector.extract_strided_slice %40 {offsets = [4, 0, 0], sizes = [8, 24, 4], strides = [1, 1, 1]} : vector<12x24x4xf32> to vector<8x24x4xf32>
    %201 = vector.extract_strided_slice %36 {offsets = [22, 0], sizes = [1, 4], strides = [1, 1]} : vector<25x4xf32> to vector<1x4xf32>
    %202 = vector.shape_cast %201 : vector<1x4xf32> to vector<4xf32>
    %203 = vector.shape_cast %202 : vector<4xf32> to vector<1x1x4xf32>
    %204 = vector.broadcast %203 : vector<1x1x4xf32> to vector<8x24x4xf32>
    %205 = arith.mulf %200, %204 : vector<8x24x4xf32>
    %206 = arith.addf %199, %205 : vector<8x24x4xf32>
    %207 = vector.extract_strided_slice %41 {offsets = [4, 0, 0], sizes = [8, 24, 4], strides = [1, 1, 1]} : vector<12x24x4xf32> to vector<8x24x4xf32>
    %208 = vector.extract_strided_slice %36 {offsets = [23, 0], sizes = [1, 4], strides = [1, 1]} : vector<25x4xf32> to vector<1x4xf32>
    %209 = vector.shape_cast %208 : vector<1x4xf32> to vector<4xf32>
    %210 = vector.shape_cast %209 : vector<4xf32> to vector<1x1x4xf32>
    %211 = vector.broadcast %210 : vector<1x1x4xf32> to vector<8x24x4xf32>
    %212 = arith.mulf %207, %211 : vector<8x24x4xf32>
    %213 = arith.addf %206, %212 : vector<8x24x4xf32>
    %214 = vector.extract_strided_slice %42 {offsets = [4, 0, 0], sizes = [8, 24, 4], strides = [1, 1, 1]} : vector<12x24x4xf32> to vector<8x24x4xf32>
    %215 = vector.extract_strided_slice %36 {offsets = [24, 0], sizes = [1, 4], strides = [1, 1]} : vector<25x4xf32> to vector<1x4xf32>
    %216 = vector.shape_cast %215 : vector<1x4xf32> to vector<4xf32>
    %217 = vector.shape_cast %216 : vector<4xf32> to vector<1x1x4xf32>
    %218 = vector.broadcast %217 : vector<1x1x4xf32> to vector<8x24x4xf32>
    %219 = arith.mulf %214, %218 : vector<8x24x4xf32>
    %220 = arith.addf %213, %219 : vector<8x24x4xf32>
    %221 = vector.extract_strided_slice %220 {offsets = [0, 0, 0], sizes = [8, 16, 4], strides = [1, 1, 1]} : vector<8x24x4xf32> to vector<8x16x4xf32>
    %222 = arith.negf %221 : vector<8x16x4xf32>
    %223 = math.exp %222 : vector<8x16x4xf32>
    %cst_24 = arith.constant 1.000000e+00 : f32
    %224 = vector.broadcast %cst_24 : f32 to vector<8x16x4xf32>
    %225 = arith.addf %224, %223 : vector<8x16x4xf32>
    %226 = arith.divf %224, %225 : vector<8x16x4xf32>
    %227 = arith.mulf %221, %226 : vector<8x16x4xf32>
    %228 = vector.extract_strided_slice %30 {offsets = [2, 0, 0], sizes = [8, 16, 4], strides = [1, 1, 1]} : vector<12x16x4xf32> to vector<8x16x4xf32>
    %229 = tpu.concatenate %228, %227 in 2 : vector<8x16x4xf32>, vector<8x16x4xf32> -> vector<8x16x8xf32>
    %c0_25 = arith.constant 0 : index
    %c0_26 = arith.constant 0 : index
    %c0_27 = arith.constant 0 : index
    %c0_28 = arith.constant 0 : index
    %230 = vector.load %arg7[%c0_25, %c0_26, %c0_27, %c0_28] : memref<1x8x16x8xf32, #tpu.memory_space<vmem>>, vector<1x8x16x8xf32>
    %231 = vector.shape_cast %230 : vector<1x8x16x8xf32> to vector<8x16x8xf32>
    %232 = vector.shape_cast %229 : vector<8x16x8xf32> to vector<1x8x16x8xf32>
    tpu.vector_store %arg7[%c0_25, %c0_26, %c0_27, %c0_28], %232 {strides = array<i32>} : memref<1x8x16x8xf32, #tpu.memory_space<vmem>>, vector<1x8x16x8xf32>,
    return
  }
  func.func @transform_0(%arg0: i32, %arg1: i32) -> (i32, i32, i32, i32) {
    %c0_i32 = arith.constant 0 : i32
    %c0_i32_0 = arith.constant 0 : i32
    %c0_i32_1 = arith.constant 0 : i32
    %c0_i32_2 = arith.constant 0 : i32
    return %arg0, %c0_i32, %c0_i32_0, %c0_i32_1 : i32, i32, i32, i32
  }
  func.func @transform_1(%arg0: i32, %arg1: i32) -> (i32, i32) {
    %c0_i32 = arith.constant 0 : i32
    %c0_i32_0 = arith.constant 0 : i32
    %c0_i32_1 = arith.constant 0 : i32
    return %c0_i32, %c0_i32_0 : i32, i32
  }
  func.func @transform_2(%arg0: i32, %arg1: i32) -> (i32, i32) {
    %c0_i32 = arith.constant 0 : i32
    %c0_i32_0 = arith.constant 0 : i32
    %c0_i32_1 = arith.constant 0 : i32
    return %c0_i32, %c0_i32_0 : i32, i32
  }
  func.func @transform_3(%arg0: i32, %arg1: i32) -> (i32, i32) {
    %c0_i32 = arith.constant 0 : i32
    %c0_i32_0 = arith.constant 0 : i32
    %c0_i32_1 = arith.constant 0 : i32
    return %c0_i32, %c0_i32_0 : i32, i32
  }
  func.func @transform_4(%arg0: i32, %arg1: i32) -> (i32, i32) {
    %c0_i32 = arith.constant 0 : i32
    %c0_i32_0 = arith.constant 0 : i32
    %c0_i32_1 = arith.constant 0 : i32
    return %c0_i32, %c0_i32_0 : i32, i32
  }
  func.func @transform_5(%arg0: i32, %arg1: i32) -> (i32, i32, i32, i32) {
    %c0_i32 = arith.constant 0 : i32
    %c0_i32_0 = arith.constant 0 : i32
    %c0_i32_1 = arith.constant 0 : i32
    return %arg0, %arg1, %c0_i32, %c0_i32_0 : i32, i32, i32, i32
  }
}

</mosaic_0001>

<llo_original>
// kernel: tpu_custom_call.1
$region0: #{tpu_custom_call.1}
  #allocation0 [shape = 'u32[]', space=smem, size = 0x4, offset = 0x4, fixed_abs, tag = 'smem constant byte address 0x4 - core index']
  #allocation1 [shape = 'u32[144,128]{1,0:T(1,128)}', space=vmem, size = 0x12000, scoped, tag = 'internal scratch']
  #allocation2 [shape = 'f32[12,24,4]{2,1,0:T(8,128)}', space=vmem, size = 0x24000, scoped, tag = 'scratch operand']
  %s0 = inlined_call_operand.hbm [shape: f32[2,20,16,4], index: 0, kind: input, shape index: {}]
  %s1 = inlined_call_operand.hbm [shape: f32[4,4], index: 1, kind: input, shape index: {}]
  %s2 = inlined_call_operand.hbm [shape: f32[1,4], index: 2, kind: input, shape index: {}]
  %s3 = inlined_call_operand.hbm [shape: f32[25,4], index: 3, kind: input, shape index: {}]
  %s4 = inlined_call_operand.hbm [shape: f32[1,4], index: 4, kind: input, shape index: {}]
  %s5 = inlined_call_operand.hbm [shape: f32[2,16,16,8], index: 5, kind: output, shape index: {}]
  %s6 = sld [smem:[#allocation0]]
  $region73: #{tpu_custom_call.1} parent=0
    _
  %s8 = ssub.s32 1, %s6
  %s9 = scalar_select 0, %s8, %s6
  $region1: #{tpu_custom_call.1} parent=0
    #allocation3 [shape = 'u8[327680]{0}', space=vmem, size = 0x50000, scoped, tag = 'input window, operand 0']
    #allocation4 [shape = 's32[2]{0}', space=sflag, size = 0x8, scoped, tag = 'scoped memory for tpu_custom_call.1']
    #allocation5 [shape = 's32[2]{0}', space=sflag, size = 0x8, scoped, tag = 'scoped memory for tpu_custom_call.1']
    #allocation6 [shape = 'u8[2048]{0}', space=vmem, size = 0x800, scoped, tag = 'input window, operand 1, single buffered']
    #allocation7 [shape = 's32[1]{0}', space=sflag, size = 0x4, scoped, tag = 'scoped memory for tpu_custom_call.1']
    #allocation8 [shape = 'u8[512]{0}', space=vmem, size = 0x400, scoped, tag = 'input window, operand 2, single buffered']
    #allocation9 [shape = 'u8[16384]{0}', space=vmem, size = 0x4000, scoped, tag = 'input window, operand 3, single buffered']
    #allocation10 [shape = 's32[1]{0}', space=sflag, size = 0x4, scoped, tag = 'scoped memory for tpu_custom_call.1']
    #allocation11 [shape = 'u8[512]{0}', space=vmem, size = 0x400, scoped, tag = 'input window, operand 4, single buffered']
    #allocation12 [shape = 'u8[131072]{0}', space=vmem, size = 0x20000, scoped, tag = 'output window, operand 0']
    %10 = vsyncpa [#allocation4], 0
    %s11 = scalar_lea.sflag [#allocation4], 1
    %12 = vsyncpa %s11, 0
    %13 = vsyncpa [#allocation7], 0
    %14 = vsyncpa [#allocation10], 0
    %15 = vsyncpa [#allocation5], 0
    %s16 = scalar_lea.sflag [#allocation5], 1
    %17 = vsyncpa %s16, 0
    loop: start=0, step=1, limit=6
    $region2: #{tpu_custom_call.1} parent=1 // loop_pre_header
      _
    $region3: #{tpu_custom_call.1} parent=1 // loop_header
      %s19 = sphi 0, %s23
      %p20 = scmp.ge.s32.totalorder %s19, 6
      %s26 = sphi 0, %s38
      %s27 = sphi 0, %s34
      %s28 = sphi 0, %s26
      %s29 = sphi 0, %s27
      %s30 = sphi 0, %s28
      %s31 = sphi 0, %s29
      %s41 = sphi 0, %s43
      %s44 = sphi 0, %s41
      %s45 = sphi 0, %s44
      %s61 = sphi 0, %s45
      %s65 = sphi 0, %s65
      %s67 = sphi 0, %s65
      %s68 = sphi 0, %s67
      %s82 = sphi 0, %s68
      %s86 = sphi 0, %s86
      %s88 = sphi 0, %s86
      %s89 = sphi 0, %s88
      %s103 = sphi 0, %s89
      %s107 = sphi 0, %s107
      %s109 = sphi 0, %s107
      %s110 = sphi 0, %s109
      %s124 = sphi 0, %s110
      %s128 = sphi 0, %s128
      %s130 = sphi 0, %s128
      %s131 = sphi 0, %s130
      %s145 = sphi 0, %s131
      %s153 = sphi 0, %s155
      %s156 = sphi 0, %s153
      %s157 = sphi 0, %s156
      %s173 = sphi 0, %s157
    $region4: #{tpu_custom_call.1} parent=1 // loop_header_branch
      %22 = sbr.rel (%p20) target = $region8
    $region5: #{tpu_custom_call.1} parent=1 // loop_body
      %s24 = ssub.s32 %s19, 1
      %s25 = ssub.s32 %s19, 2
      %s32 = sadd.s32 1, %s27
      %p33 = scmp.ge.s32.totalorder %s32, 2
      %s34 = scalar_select %p33, 0, %s32
      %s35 = sadd.s32 1, %s26
      %s36 = scalar_select %p33, %s35, %s26
      %p37 = scmp.ge.s32.totalorder %s36, 2
      %s38 = scalar_select %p37, 0, %s36
      %s39 = ssub.s32 %s26, %s38
      %p40 = scmp.eq.s32.totalorder %s39, 0
      %s42 = sadd.s32 %s41, 1
      %s43 = scalar_select %p40, %s41, %s42
      %p46 = pneg %p40
      %p47 = scmp.eq.s32.totalorder %s19, 3
      %p48 = por %p46, %p47
      %p49 = scmp.ne.s32.totalorder %s41, %s44
      %p50 = scmp.eq.s32.totalorder %s19, 0
      %p51 = por %p49, %p50
      %p52 = scmp.ne.s32.totalorder %s41, %s44
      %p53 = scmp.eq.s32.totalorder %s24, 3
      %p54 = por %p52, %p53
      %p55 = scmp.ne.s32.totalorder %s44, %s45
      %p56 = scmp.eq.s32.totalorder %s24, 0
      %p57 = por %p55, %p56
      %p58 = scmp.ne.s32.totalorder %s44, %s45
      %p59 = scmp.eq.s32.totalorder %s25, 3
      %p60 = por %p58, %p59
      %p62 = scmp.ne.s32.totalorder %s45, %s61
      %p63 = scmp.eq.s32.totalorder %s25, 0
      %p64 = por %p62, %p63
      %s66 = sadd.s32 %s65, 1
      %p69 = scmp.eq.s32.totalorder %s19, 3
      %p70 = scmp.ne.s32.totalorder %s65, %s67
      %p71 = scmp.eq.s32.totalorder %s19, 0
      %p72 = por %p70, %p71
      %p73 = scmp.ne.s32.totalorder %s65, %s67
      %p74 = scmp.eq.s32.totalorder %s24, 3
      %p75 = por %p73, %p74
      %p76 = scmp.ne.s32.totalorder %s67, %s68
      %p77 = scmp.eq.s32.totalorder %s24, 0
      %p78 = por %p76, %p77
      %p79 = scmp.ne.s32.totalorder %s67, %s68
      %p80 = scmp.eq.s32.totalorder %s25, 3
      %p81 = por %p79, %p80
      %p83 = scmp.ne.s32.totalorder %s68, %s82
      %p84 = scmp.eq.s32.totalorder %s25, 0
      %p85 = por %p83, %p84
      %s87 = sadd.s32 %s86, 1
      %p90 = scmp.eq.s32.totalorder %s19, 3
      %p91 = scmp.ne.s32.totalorder %s86, %s88
      %p92 = scmp.eq.s32.totalorder %s19, 0
      %p93 = por %p91, %p92
      %p94 = scmp.ne.s32.totalorder %s86, %s88
      %p95 = scmp.eq.s32.totalorder %s24, 3
      %p96 = por %p94, %p95
      %p97 = scmp.ne.s32.totalorder %s88, %s89
      %p98 = scmp.eq.s32.totalorder %s24, 0
      %p99 = por %p97, %p98
      %p100 = scmp.ne.s32.totalorder %s88, %s89
      %p101 = scmp.eq.s32.totalorder %s25, 3
      %p102 = por %p100, %p101
      %p104 = scmp.ne.s32.totalorder %s89, %s103
      %p105 = scmp.eq.s32.totalorder %s25, 0
      %p106 = por %p104, %p105
      %s108 = sadd.s32 %s107, 1
      %p111 = scmp.eq.s32.totalorder %s19, 3
      %p112 = scmp.ne.s32.totalorder %s107, %s109
      %p113 = scmp.eq.s32.totalorder %s19, 0
      %p114 = por %p112, %p113
      %p115 = scmp.ne.s32.totalorder %s107, %s109
      %p116 = scmp.eq.s32.totalorder %s24, 3
      %p117 = por %p115, %p116
      %p118 = scmp.ne.s32.totalorder %s109, %s110
      %p119 = scmp.eq.s32.totalorder %s24, 0
      %p120 = por %p118, %p119
      %p121 = scmp.ne.s32.totalorder %s109, %s110
      %p122 = scmp.eq.s32.totalorder %s25, 3
      %p123 = por %p121, %p122
      %p125 = scmp.ne.s32.totalorder %s110, %s124
      %p126 = scmp.eq.s32.totalorder %s25, 0
      %p127 = por %p125, %p126
      %s129 = sadd.s32 %s128, 1
      %p132 = scmp.eq.s32.totalorder %s19, 3
      %p133 = scmp.ne.s32.totalorder %s128, %s130
      %p134 = scmp.eq.s32.totalorder %s19, 0
      %p135 = por %p133, %p134
      %p136 = scmp.ne.s32.totalorder %s128, %s130
      %p137 = scmp.eq.s32.totalorder %s24, 3
      %p138 = por %p136, %p137
      %p139 = scmp.ne.s32.totalorder %s130, %s131
      %p140 = scmp.eq.s32.totalorder %s24, 0
      %p141 = por %p139, %p140
      %p142 = scmp.ne.s32.totalorder %s130, %s131
      %p143 = scmp.eq.s32.totalorder %s25, 3
      %p144 = por %p142, %p143
      %p146 = scmp.ne.s32.totalorder %s131, %s145
      %p147 = scmp.eq.s32.totalorder %s25, 0
      %p148 = por %p146, %p147
      %s149 = ssub.s32 %s26, %s38
      %s150 = ssub.s32 %s27, %s34
      %s151 = sor.u32 %s149, %s150
      %p152 = scmp.eq.s32.totalorder %s151, 0
      %s154 = sadd.s32 %s153, 1
      %s155 = scalar_select %p152, %s153, %s154
      %p158 = pneg %p152
      %p159 = scmp.eq.s32.totalorder %s19, 3
      %p160 = por %p158, %p159
      %p161 = scmp.ne.s32.totalorder %s153, %s156
      %p162 = scmp.eq.s32.totalorder %s19, 0
      %p163 = por %p161, %p162
      %p164 = scmp.ne.s32.totalorder %s153, %s156
      %p165 = scmp.eq.s32.totalorder %s24, 3
      %p166 = por %p164, %p165
      %p167 = scmp.ne.s32.totalorder %s156, %s157
      %p168 = scmp.eq.s32.totalorder %s24, 0
      %p169 = por %p167, %p168
      %p170 = scmp.ne.s32.totalorder %s156, %s157
      %p171 = scmp.eq.s32.totalorder %s25, 3
      %p172 = por %p170, %p171
      %p174 = scmp.ne.s32.totalorder %s157, %s173
      %p175 = scmp.eq.s32.totalorder %s25, 0
      %p176 = por %p174, %p175
      %p177 = scmp.le.s32.totalorder 1, %s19
      %p178 = scmp.lt.s32.totalorder %s19, 5
      %p179 = pnand %p177, %p178
      %p180 = pneg %p179
      // Predicated region
      $region9: #{tpu_custom_call.1} parent=5 // pred_check
        _
      $region10: #{tpu_custom_call.1} parent=5 // pred_check_branch
        %182 = sbr.rel (%p179) target = $region12
      $region11: #{tpu_custom_call.1} parent=5 // pred_region
        %s183 = ssub.s32 %s19, 1
        // Predicated region
        $region13: #{tpu_custom_call.1} parent=11 // pred_check
          %p184 = pneg %p78
        $region14: #{tpu_custom_call.1} parent=11 // pred_check_branch
          %186 = sbr.rel (%p184) target = $region16
        $region15: #{tpu_custom_call.1} parent=11 // pred_region
          %s188 = ssub.s32 64, 64
          %189 = vsyncadd [#allocation7], %s188
          %s191 = sshll.u32 [#allocation6], 4
          %s192 = int_to_ptr.vmem [resolvable:$true] %s191
          %194 = dma.hbm_to_vmem [thread:$0]  %s1, 64, %s192, [#allocation7]
        $region16: #{tpu_custom_call.1} parent=11 // pred_fallthru
          _
        // Predicated region
        $region17: #{tpu_custom_call.1} parent=11 // pred_check
          %p195 = pneg %p99
        $region18: #{tpu_custom_call.1} parent=11 // pred_check_branch
          %197 = sbr.rel (%p195) target = $region20
        $region19: #{tpu_custom_call.1} parent=11 // pred_region
          %s199 = ssub.s32 16, 16
          %200 = vsyncadd [#allocation7], %s199
          %s202 = sshll.u32 [#allocation8], 4
          %s203 = int_to_ptr.vmem [resolvable:$true] %s202
          %205 = dma.hbm_to_vmem [thread:$0]  %s2, 16, %s203, [#allocation7]
        $region20: #{tpu_custom_call.1} parent=11 // pred_fallthru
          _
        // Predicated region
        $region21: #{tpu_custom_call.1} parent=11 // pred_check
          %p206 = pneg %p120
        $region22: #{tpu_custom_call.1} parent=11 // pred_check_branch
          %208 = sbr.rel (%p206) target = $region24
        $region23: #{tpu_custom_call.1} parent=11 // pred_region
          %s210 = ssub.s32 512, 512
          %211 = vsyncadd [#allocation10], %s210
          %s212 = sshll.u32 [#allocation9], 4
          %s213 = int_to_ptr.vmem [resolvable:$true] %s212
          %218 = dma.hbm_to_vmem [thread:$0]  %s3, 512, %s213, [#allocation10], 128, 128, 8
        $region24: #{tpu_custom_call.1} parent=11 // pred_fallthru
          _
        // Predicated region
        $region25: #{tpu_custom_call.1} parent=11 // pred_check
          %p219 = pneg %p141
        $region26: #{tpu_custom_call.1} parent=11 // pred_check_branch
          %221 = sbr.rel (%p219) target = $region28
        $region27: #{tpu_custom_call.1} parent=11 // pred_region
          %s223 = ssub.s32 16, 16
          %224 = vsyncadd [#allocation10], %s223
          %s226 = sshll.u32 [#allocation11], 4
          %s227 = int_to_ptr.vmem [resolvable:$true] %s226
          %229 = dma.hbm_to_vmem [thread:$0]  %s4, 16, %s227, [#allocation10]
        $region28: #{tpu_custom_call.1} parent=11 // pred_fallthru
          _
      $region12: #{tpu_custom_call.1} parent=5 // pred_fallthru
        _
      %p230 = scmp.lt.s32.totalorder %s19, 4
      // Predicated region
      $region29: #{tpu_custom_call.1} parent=5 // pred_check
        %p231 = pneg %p230
      $region30: #{tpu_custom_call.1} parent=5 // pred_check_branch
        %233 = sbr.rel (%p231) target = $region32
      $region31: #{tpu_custom_call.1} parent=5 // pred_region
        // Predicated region
        $region33: #{tpu_custom_call.1} parent=31 // pred_check
          %p234 = pneg %p51
        $region34: #{tpu_custom_call.1} parent=31 // pred_check_branch
          %236 = sbr.rel (%p234) target = $region36
        $region35: #{tpu_custom_call.1} parent=31 // pred_region
          %s237 = sand.u32 %s41, 1
          %s238 = scalar_lea.sflag [#allocation4], %s237
          %s239 = sand.u32 %s41, 1
          %s240 = smul.addr %s239, 320
          %s241 = scalar_lea.vmem [#allocation3], %s240
          %s243 = ssub.s32 5120, 5120
          %244 = vsyncadd %s238, %s243
          %s245 = smul.addr %s26, 40
          %s246 = smul.addr %s245, 128
          %s247 = scalar_lea.hbm %s0, %s246
          %s248 = sshll.u32 %s241, 4
          %s249 = int_to_ptr.vmem [resolvable:$true] %s248
          %254 = dma.hbm_to_vmem [thread:$0]  %s247, 5120, %s249, %s238, 128, 128, 8
        $region36: #{tpu_custom_call.1} parent=31 // pred_fallthru
          _
      $region32: #{tpu_custom_call.1} parent=5 // pred_fallthru
        _
      %p255 = scmp.le.s32.totalorder 1, %s19
      %p256 = scmp.lt.s32.totalorder %s19, 5
      %p257 = pnand %p255, %p256
      %p258 = pneg %p257
      // Predicated region
      $region37: #{tpu_custom_call.1} parent=5 // pred_check
        _
      $region38: #{tpu_custom_call.1} parent=5 // pred_check_branch
        %260 = sbr.rel (%p257) target = $region40
      $region39: #{tpu_custom_call.1} parent=5 // pred_region
        %s261 = ssub.s32 %s19, 1
        %s262 = sand.u32 %s44, 1
        %s263 = scalar_lea.sflag [#allocation4], %s262
        %s264 = sand.u32 %s44, 1
        %s265 = smul.addr %s264, 320
        %s266 = scalar_lea.vmem [#allocation3], %s265
        // Predicated region
        $region41: #{tpu_custom_call.1} parent=39 // pred_check
          %p267 = pneg %p57
        $region42: #{tpu_custom_call.1} parent=39 // pred_check_branch
          %269 = sbr.rel (%p267) target = $region44
        $region43: #{tpu_custom_call.1} parent=39 // pred_region
          %270 = dma.done %s263, 5120
        $region44: #{tpu_custom_call.1} parent=39 // pred_fallthru
          _
        // Predicated region
        $region45: #{tpu_custom_call.1} parent=39 // pred_check
          %p271 = pneg %p78
        $region46: #{tpu_custom_call.1} parent=39 // pred_check_branch
          %273 = sbr.rel (%p271) target = $region48
        $region47: #{tpu_custom_call.1} parent=39 // pred_region
          %274 = dma.done [#allocation7], 64
        $region48: #{tpu_custom_call.1} parent=39 // pred_fallthru
          _
        // Predicated region
        $region49: #{tpu_custom_call.1} parent=39 // pred_check
          %p275 = pneg %p99
        $region50: #{tpu_custom_call.1} parent=39 // pred_check_branch
          %277 = sbr.rel (%p275) target = $region52
        $region51: #{tpu_custom_call.1} parent=39 // pred_region
          %278 = dma.done [#allocation7], 16
        $region52: #{tpu_custom_call.1} parent=39 // pred_fallthru
          _
        // Predicated region
        $region53: #{tpu_custom_call.1} parent=39 // pred_check
          %p279 = pneg %p120
        $region54: #{tpu_custom_call.1} parent=39 // pred_check_branch
          %281 = sbr.rel (%p279) target = $region56
        $region55: #{tpu_custom_call.1} parent=39 // pred_region
          %282 = dma.done [#allocation10], 512
        $region56: #{tpu_custom_call.1} parent=39 // pred_fallthru
          _
        // Predicated region
        $region57: #{tpu_custom_call.1} parent=39 // pred_check
          %p283 = pneg %p141
        $region58: #{tpu_custom_call.1} parent=39 // pred_check_branch
          %285 = sbr.rel (%p283) target = $region60
        $region59: #{tpu_custom_call.1} parent=39 // pred_region
          %286 = dma.done [#allocation10], 16
        $region60: #{tpu_custom_call.1} parent=39 // pred_fallthru
          _
        %s287 = sand.u32 %s44, 1
        %s288 = scalar_lea.sflag [#allocation4], %s287
        %s289 = sand.u32 %s44, 1
        %s290 = smul.addr %s289, 320
        %s291 = scalar_lea.vmem [#allocation3], %s290
        %p292 = pneg %p57
        %p293 = pneg %p54
        %p294 = pneg %p78
        %p295 = pneg %p75
        %p296 = pneg %p99
        %p297 = pneg %p96
        %p298 = pneg %p120
        %p299 = pneg %p117
        %p300 = pneg %p141
        %p301 = pneg %p138
        %p302 = pneg %p169
        %p303 = pneg %p166
        %s304 = sand.u32 %s156, 1
        %s305 = scalar_lea.sflag [#allocation5], %s304
        %s306 = sand.u32 %s156, 1
        %s307 = smul.addr %s306, 128
        %s308 = scalar_lea.vmem [#allocation12], %s307
        %s309 = smul.u32 8, %s29
        %s310 = smul.u32 %s29, 8
        %s311 = smul.u32 %s310, 16
        %s312 = scalar_lea.vmem %s266, %s311 [#allocation3]
        %v313 = vld [vmem:[%s312] sm:$0xff]
        %v314 = vld [vmem:[%s312 + $0x8] sm:$0xff]
        %v315 = vld [vmem:[%s312 + $0x10] sm:$0xff]
        %v316 = vld [vmem:[%s312 + $0x18] sm:$0xff]
        %v317 = vld [vmem:[%s312 + $0x20] sm:$0xff]
        %v318 = vld [vmem:[%s312 + $0x28] sm:$0xff]
        %v319 = vld [vmem:[%s312 + $0x30] sm:$0xff]
        %v320 = vld [vmem:[%s312 + $0x38] sm:$0xff]
        %v321 = vld [vmem:[%s312 + $0x40] sm:$0xff]
        %v322 = vld [vmem:[%s312 + $0x48] sm:$0xff]
        %v323 = vld [vmem:[%s312 + $0x50] sm:$0xff]
        %v324 = vld [vmem:[%s312 + $0x58] sm:$0xff]
        %v325 = vld [vmem:[%s312 + $0x60] sm:$0xff]
        %v326 = vld [vmem:[%s312 + $0x68] sm:$0xff]
        %v327 = vld [vmem:[%s312 + $0x70] sm:$0xff]
        %v328 = vld [vmem:[%s312 + $0x78] sm:$0xff]
        %v329 = vld [vmem:[%s312 + $0x80] sm:$0xff]
        %v330 = vld [vmem:[%s312 + $0x88] sm:$0xff]
        %v331 = vld [vmem:[%s312 + $0x90] sm:$0xff]
        %v332 = vld [vmem:[%s312 + $0x98] sm:$0xff]
        %v333 = vld [vmem:[%s312 + $0xa0] sm:$0xff]
        %v334 = vld [vmem:[%s312 + $0xa8] sm:$0xff]
        %v335 = vld [vmem:[%s312 + $0xb0] sm:$0xff]
        %v336 = vld [vmem:[%s312 + $0xb8] sm:$0xff]
        %v337 = vld [vmem:[#allocation6] sm:$0xf]
        %v338 = vld [vmem:[#allocation8] sm:$0x1]
        %v340 = vlaneseq
        %v341 = vshrl.u32 %v340, 7
        %v342 = vsub.s32 0, %v341
        %v343 = vrot.slane %v338, %v342
        %vm345 = vcmask 31744
        %v347 = vsel %vm345, %v313, 0
        %v350 = vsel %vm345, %v314, 0
        %v353 = vsel %vm345, %v315, 0
        %v356 = vsel %vm345, %v316, 0
        %v359 = vsel %vm345, %v317, 0
        %v362 = vsel %vm345, %v318, 0
        %v365 = vsel %vm345, %v319, 0
        %v368 = vsel %vm345, %v320, 0
        %v371 = vsel %vm345, %v321, 0
        %v374 = vsel %vm345, %v322, 0
        %v377 = vsel %vm345, %v323, 0
        %v380 = vsel %vm345, %v324, 0
        %v383 = vsel %vm345, %v325, 0
        %v386 = vsel %vm345, %v326, 0
        %v389 = vsel %vm345, %v327, 0
        %v392 = vsel %vm345, %v328, 0
        %v395 = vsel %vm345, %v329, 0
        %v398 = vsel %vm345, %v330, 0
        %v401 = vsel %vm345, %v331, 0
        %v404 = vsel %vm345, %v332, 0
        %v407 = vsel %vm345, %v333, 0
        %v410 = vsel %vm345, %v334, 0
        %v413 = vsel %vm345, %v335, 0
        %v416 = vsel %vm345, %v336, 0
        %vm418 = vcmask 1043456
        %v420 = vsel %vm418, %v337, 0
        %422 = vmatprep.subr.mxu0 0.0
        %423 = vmatpush1.msra.mxu0 %v420
        %424 = vmatprep.subr.mxu0 0.0
        %425 = vmatpush1.msra.mxu0 0.0
        %426 = vmatprep.subr.mxu0 0.0
        %427 = vmatpush1.msra.mxu0 0.0
        %428 = vmatprep.subr.mxu0 0.0
        %429 = vmatpush1.msra.mxu0 0.0
        %430 = vmatprep.subr.mxu0 0.0
        %431 = vmatpush1.msra.mxu0 0.0
        %432 = vmatprep.subr.mxu0 0.0
        %433 = vmatpush1.msra.mxu0 0.0
        %434 = vmatprep.subr.mxu0 0.0
        %435 = vmatpush1.msra.mxu0 0.0
        %436 = vmatprep.subr.mxu0 0.0
        %437 = vmatpush1.msra.mxu0 0.0
        %438 = vmatprep.subr.mxu0 0.0
        %439 = vmatpush1.msra.mxu0 0.0
        %440 = vmatprep.subr.mxu0 0.0
        %441 = vmatpush1.msra.mxu0 0.0
        %442 = vmatprep.subr.mxu0 0.0
        %443 = vmatpush1.msra.mxu0 0.0
        %444 = vmatprep.subr.mxu0 0.0
        %445 = vmatpush1.msra.mxu0 0.0
        %446 = vmatprep.subr.mxu0 0.0
        %447 = vmatpush1.msra.mxu0 0.0
        %448 = vmatprep.subr.mxu0 0.0
        %449 = vmatpush1.msra.mxu0 0.0
        %450 = vmatprep.subr.mxu0 0.0
        %451 = vmatpush1.msra.mxu0 0.0
        %452 = vmatprep.subr.mxu0 0.0
        %453 = vmatpush1.msra.mxu0 0.0
        %454 = vmatprep.subr.mxu0 0.0
        %455 = vmatpush1.msra.mxu0 0.0
        %456 = vmatprep.subr.mxu0 0.0
        %457 = vmatpush1.msra.mxu0 0.0
        %458 = vmatprep.subr.mxu0 0.0
        %459 = vmatpush1.msra.mxu0 0.0
        %460 = vmatprep.subr.mxu0 0.0
        %461 = vmatpush1.msra.mxu0 0.0
        %462 = vmatprep.subr.mxu0 0.0
        %463 = vmatpush1.msra.mxu0 0.0
        %464 = vmatprep.subr.mxu0 0.0
        %465 = vmatpush1.msra.mxu0 0.0
        %466 = vmatprep.subr.mxu0 0.0
        %467 = vmatpush1.msra.mxu0 0.0
        %468 = vmatprep.subr.mxu0 0.0
        %469 = vmatpush1.msra.mxu0 0.0
        %470 = vmatprep.subr.mxu0 0.0
        %471 = vmatpush1.msra.mxu0 0.0
        %472 = vmatprep.subr.mxu0 0.0
        %473 = vmatpush1.msra.mxu0 0.0
        %474 = vmatprep.subr.mxu0 0.0
        %475 = vmatpush1.msra.mxu0 0.0
        %476 = vmatprep.subr.mxu0 0.0
        %477 = vmatpush1.msra.mxu0 0.0
        %478 = vmatprep.subr.mxu0 0.0
        %479 = vmatpush1.msra.mxu0 0.0
        %480 = vmatprep.subr.mxu0 0.0
        %481 = vmatpush1.msra.mxu0 0.0
        %482 = vmatprep.subr.mxu0 0.0
        %483 = vmatpush1.msra.mxu0 0.0
        %484 = vmatprep.subr.mxu0 0.0
        %485 = vmatpush1.msra.mxu0 0.0
        %486 = vmatprep.mubr.f32.mxu0 0.0
        %487 = vmatmul.mubr.f32.gmra.mrb[0].mxu0 %v347
        %v488 = vpop.f32.mrb[0].mxu0
        %v489 = vadd.f32 %v343, %v488
        %v490 = vpop.f32.mrb[0].mxu0
        %491 = vmatprep.mubr.f32.mxu0 0.0
        %492 = vmatmul.mubr.f32.gmra.mrb[0].mxu0 %v350
        %v493 = vpop.f32.mrb[0].mxu0
        %v494 = vadd.f32 %v343, %v493
        %v495 = vpop.f32.mrb[0].mxu0
        %496 = vmatprep.mubr.f32.mxu0 0.0
        %497 = vmatmul.mubr.f32.gmra.mrb[0].mxu0 %v353
        %v498 = vpop.f32.mrb[0].mxu0
        %v499 = vadd.f32 %v343, %v498
        %v500 = vpop.f32.mrb[0].mxu0
        %501 = vmatprep.mubr.f32.mxu0 0.0
        %502 = vmatmul.mubr.f32.gmra.mrb[0].mxu0 %v356
        %v503 = vpop.f32.mrb[0].mxu0
        %v504 = vadd.f32 %v343, %v503
        %v505 = vpop.f32.mrb[0].mxu0
        %506 = vmatprep.mubr.f32.mxu0 0.0
        %507 = vmatmul.mubr.f32.gmra.mrb[0].mxu0 %v359
        %v508 = vpop.f32.mrb[0].mxu0
        %v509 = vadd.f32 %v343, %v508
        %v510 = vpop.f32.mrb[0].mxu0
        %511 = vmatprep.mubr.f32.mxu0 0.0
        %512 = vmatmul.mubr.f32.gmra.mrb[0].mxu0 %v362
        %v513 = vpop.f32.mrb[0].mxu0
        %v514 = vadd.f32 %v343, %v513
        %v515 = vpop.f32.mrb[0].mxu0
        %516 = vmatprep.mubr.f32.mxu0 0.0
        %517 = vmatmul.mubr.f32.gmra.mrb[0].mxu0 %v365
        %v518 = vpop.f32.mrb[0].mxu0
        %v519 = vadd.f32 %v343, %v518
        %v520 = vpop.f32.mrb[0].mxu0
        %521 = vmatprep.mubr.f32.mxu0 0.0
        %522 = vmatmul.mubr.f32.gmra.mrb[0].mxu0 %v368
        %v523 = vpop.f32.mrb[0].mxu0
        %v524 = vadd.f32 %v343, %v523
        %v525 = vpop.f32.mrb[0].mxu0
        %526 = vmatprep.mubr.f32.mxu0 0.0
        %527 = vmatmul.mubr.f32.gmra.mrb[0].mxu0 %v371
        %v528 = vpop.f32.mrb[0].mxu0
        %v529 = vadd.f32 %v343, %v528
        %v530 = vpop.f32.mrb[0].mxu0
        %531 = vmatprep.mubr.f32.mxu0 0.0
        %532 = vmatmul.mubr.f32.gmra.mrb[0].mxu0 %v374
        %v533 = vpop.f32.mrb[0].mxu0
        %v534 = vadd.f32 %v343, %v533
        %v535 = vpop.f32.mrb[0].mxu0
        %536 = vmatprep.mubr.f32.mxu0 0.0
        %537 = vmatmul.mubr.f32.gmra.mrb[0].mxu0 %v377
        %v538 = vpop.f32.mrb[0].mxu0
        %v539 = vadd.f32 %v343, %v538
        %v540 = vpop.f32.mrb[0].mxu0
        %541 = vmatprep.mubr.f32.mxu0 0.0
        %542 = vmatmul.mubr.f32.gmra.mrb[0].mxu0 %v380
        %v543 = vpop.f32.mrb[0].mxu0
        %v544 = vadd.f32 %v343, %v543
        %v545 = vpop.f32.mrb[0].mxu0
        %546 = vmatprep.mubr.f32.mxu0 0.0
        %547 = vmatmul.mubr.f32.gmra.mrb[0].mxu0 %v383
        %v548 = vpop.f32.mrb[0].mxu0
        %v549 = vadd.f32 %v343, %v548
        %v550 = vpop.f32.mrb[0].mxu0
        %551 = vmatprep.mubr.f32.mxu0 0.0
        %552 = vmatmul.mubr.f32.gmra.mrb[0].mxu0 %v386
        %v553 = vpop.f32.mrb[0].mxu0
        %v554 = vadd.f32 %v343, %v553
        %v555 = vpop.f32.mrb[0].mxu0
        %556 = vmatprep.mubr.f32.mxu0 0.0
        %557 = vmatmul.mubr.f32.gmra.mrb[0].mxu0 %v389
        %v558 = vpop.f32.mrb[0].mxu0
        %v559 = vadd.f32 %v343, %v558
        %v560 = vpop.f32.mrb[0].mxu0
        %561 = vmatprep.mubr.f32.mxu0 0.0
        %562 = vmatmul.mubr.f32.gmra.mrb[0].mxu0 %v392
        %v563 = vpop.f32.mrb[0].mxu0
        %v564 = vadd.f32 %v343, %v563
        %v565 = vpop.f32.mrb[0].mxu0
        %566 = vmatprep.mubr.f32.mxu0 0.0
        %567 = vmatmul.mubr.f32.gmra.mrb[0].mxu0 %v395
        %v568 = vpop.f32.mrb[0].mxu0
        %v569 = vadd.f32 %v343, %v568
        %v570 = vpop.f32.mrb[0].mxu0
        %571 = vmatprep.mubr.f32.mxu0 0.0
        %572 = vmatmul.mubr.f32.gmra.mrb[0].mxu0 %v398
        %v573 = vpop.f32.mrb[0].mxu0
        %v574 = vadd.f32 %v343, %v573
        %v575 = vpop.f32.mrb[0].mxu0
        %576 = vmatprep.mubr.f32.mxu0 0.0
        %577 = vmatmul.mubr.f32.gmra.mrb[0].mxu0 %v401
        %v578 = vpop.f32.mrb[0].mxu0
        %v579 = vadd.f32 %v343, %v578
        %v580 = vpop.f32.mrb[0].mxu0
        %581 = vmatprep.mubr.f32.mxu0 0.0
        %582 = vmatmul.mubr.f32.gmra.mrb[0].mxu0 %v404
        %v583 = vpop.f32.mrb[0].mxu0
        %v584 = vadd.f32 %v343, %v583
        %v585 = vpop.f32.mrb[0].mxu0
        %586 = vmatprep.mubr.f32.mxu0 0.0
        %587 = vmatmul.mubr.f32.gmra.mrb[0].mxu0 %v407
        %v588 = vpop.f32.mrb[0].mxu0
        %v589 = vadd.f32 %v343, %v588
        %v590 = vpop.f32.mrb[0].mxu0
        %591 = vmatprep.mubr.f32.mxu0 0.0
        %592 = vmatmul.mubr.f32.gmra.mrb[0].mxu0 %v410
        %v593 = vpop.f32.mrb[0].mxu0
        %v594 = vadd.f32 %v343, %v593
        %v595 = vpop.f32.mrb[0].mxu0
        %596 = vmatprep.mubr.f32.mxu0 0.0
        %597 = vmatmul.mubr.f32.gmra.mrb[0].mxu0 %v413
        %v598 = vpop.f32.mrb[0].mxu0
        %v599 = vadd.f32 %v343, %v598
        %v600 = vpop.f32.mrb[0].mxu0
        %601 = vmatprep.mubr.f32.mxu0 0.0
        %602 = vmatmul.mubr.f32.gmra.mrb[0].mxu0 %v416
        %v603 = vpop.f32.mrb[0].mxu0
        %v604 = vadd.f32 %v343, %v603
        %v605 = vpop.f32.mrb[0].mxu0
        %606 = vdwg.mxu0
        %v607 = vxor.u32 %v489, 2147483648
        %v608 = vxor.u32 %v494, 2147483648
        %v609 = vxor.u32 %v499, 2147483648
        %v610 = vxor.u32 %v504, 2147483648
        %v611 = vxor.u32 %v509, 2147483648
        %v612 = vxor.u32 %v514, 2147483648
        %v613 = vxor.u32 %v519, 2147483648
        %v614 = vxor.u32 %v524, 2147483648
        %v615 = vxor.u32 %v529, 2147483648
        %v616 = vxor.u32 %v534, 2147483648
        %v617 = vxor.u32 %v539, 2147483648
        %v618 = vxor.u32 %v544, 2147483648
        %v619 = vxor.u32 %v549, 2147483648
        %v620 = vxor.u32 %v554, 2147483648
        %v621 = vxor.u32 %v559, 2147483648
        %v622 = vxor.u32 %v564, 2147483648
        %v623 = vxor.u32 %v569, 2147483648
        %v624 = vxor.u32 %v574, 2147483648
        %v625 = vxor.u32 %v579, 2147483648
        %v626 = vxor.u32 %v584, 2147483648
        %v627 = vxor.u32 %v589, 2147483648
        %v628 = vxor.u32 %v594, 2147483648
        %v629 = vxor.u32 %v599, 2147483648
        %v630 = vxor.u32 %v604, 2147483648
        %v631 = vmul.f32 %v607, 1.442695
        %v632 = vpow.pop %v631
        %v633 = vmul.f32 %v608, 1.442695
        %v634 = vpow.pop %v633
        %v635 = vmul.f32 %v609, 1.442695
        %v636 = vpow.pop %v635
        %v637 = vmul.f32 %v610, 1.442695
        %v638 = vpow.pop %v637
        %v639 = vmul.f32 %v611, 1.442695
        %v640 = vpow.pop %v639
        %v641 = vmul.f32 %v612, 1.442695
        %v642 = vpow.pop %v641
        %v643 = vmul.f32 %v613, 1.442695
        %v644 = vpow.pop %v643
        %v645 = vmul.f32 %v614, 1.442695
        %v646 = vpow.pop %v645
        %v647 = vmul.f32 %v615, 1.442695
        %v648 = vpow.pop %v647
        %v649 = vmul.f32 %v616, 1.442695
        %v650 = vpow.pop %v649
        %v651 = vmul.f32 %v617, 1.442695
        %v652 = vpow.pop %v651
        %v653 = vmul.f32 %v618, 1.442695
        %v654 = vpow.pop %v653
        %v655 = vmul.f32 %v619, 1.442695
        %v656 = vpow.pop %v655
        %v657 = vmul.f32 %v620, 1.442695
        %v658 = vpow.pop %v657
        %v659 = vmul.f32 %v621, 1.442695
        %v660 = vpow.pop %v659
        %v661 = vmul.f32 %v622, 1.442695
        %v662 = vpow.pop %v661
        %v663 = vmul.f32 %v623, 1.442695
        %v664 = vpow.pop %v663
        %v665 = vmul.f32 %v624, 1.442695
        %v666 = vpow.pop %v665
        %v667 = vmul.f32 %v625, 1.442695
        %v668 = vpow.pop %v667
        %v669 = vmul.f32 %v626, 1.442695
        %v670 = vpow.pop %v669
        %v671 = vmul.f32 %v627, 1.442695
        %v672 = vpow.pop %v671
        %v673 = vmul.f32 %v628, 1.442695
        %v674 = vpow.pop %v673
        %v675 = vmul.f32 %v629, 1.442695
        %v676 = vpow.pop %v675
        %v677 = vmul.f32 %v630, 1.442695
        %v678 = vpow.pop %v677
        %v679 = vadd.f32 %v632, 1.0
        %v680 = vadd.f32 %v634, 1.0
        %v681 = vadd.f32 %v636, 1.0
        %v682 = vadd.f32 %v638, 1.0
        %v683 = vadd.f32 %v640, 1.0
        %v684 = vadd.f32 %v642, 1.0
        %v685 = vadd.f32 %v644, 1.0
        %v686 = vadd.f32 %v646, 1.0
        %v687 = vadd.f32 %v648, 1.0
        %v688 = vadd.f32 %v650, 1.0
        %v689 = vadd.f32 %v652, 1.0
        %v690 = vadd.f32 %v654, 1.0
        %v691 = vadd.f32 %v656, 1.0
        %v692 = vadd.f32 %v658, 1.0
        %v693 = vadd.f32 %v660, 1.0
        %v694 = vadd.f32 %v662, 1.0
        %v695 = vadd.f32 %v664, 1.0
        %v696 = vadd.f32 %v666, 1.0
        %v697 = vadd.f32 %v668, 1.0
        %v698 = vadd.f32 %v670, 1.0
        %v699 = vadd.f32 %v672, 1.0
        %v700 = vadd.f32 %v674, 1.0
        %v701 = vadd.f32 %v676, 1.0
        %v702 = vadd.f32 %v678, 1.0
        %v703 = vrcp.pop %v679
        %v704 = vmul.f32 1.0, %v703
        %v705 = vrcp.pop %v680
        %v706 = vmul.f32 1.0, %v705
        %v707 = vrcp.pop %v681
        %v708 = vmul.f32 1.0, %v707
        %v709 = vrcp.pop %v682
        %v710 = vmul.f32 1.0, %v709
        %v711 = vrcp.pop %v683
        %v712 = vmul.f32 1.0, %v711
        %v713 = vrcp.pop %v684
        %v714 = vmul.f32 1.0, %v713
        %v715 = vrcp.pop %v685
        %v716 = vmul.f32 1.0, %v715
        %v717 = vrcp.pop %v686
        %v718 = vmul.f32 1.0, %v717
        %v719 = vrcp.pop %v687
        %v720 = vmul.f32 1.0, %v719
        %v721 = vrcp.pop %v688
        %v722 = vmul.f32 1.0, %v721
        %v723 = vrcp.pop %v689
        %v724 = vmul.f32 1.0, %v723
        %v725 = vrcp.pop %v690
        %v726 = vmul.f32 1.0, %v725
        %v727 = vrcp.pop %v691
        %v728 = vmul.f32 1.0, %v727
        %v729 = vrcp.pop %v692
        %v730 = vmul.f32 1.0, %v729
        %v731 = vrcp.pop %v693
        %v732 = vmul.f32 1.0, %v731
        %v733 = vrcp.pop %v694
        %v734 = vmul.f32 1.0, %v733
        %v735 = vrcp.pop %v695
        %v736 = vmul.f32 1.0, %v735
        %v737 = vrcp.pop %v696
        %v738 = vmul.f32 1.0, %v737
        %v739 = vrcp.pop %v697
        %v740 = vmul.f32 1.0, %v739
        %v741 = vrcp.pop %v698
        %v742 = vmul.f32 1.0, %v741
        %v743 = vrcp.pop %v699
        %v744 = vmul.f32 1.0, %v743
        %v745 = vrcp.pop %v700
        %v746 = vmul.f32 1.0, %v745
        %v747 = vrcp.pop %v701
        %v748 = vmul.f32 1.0, %v747
        %v749 = vrcp.pop %v702
        %v750 = vmul.f32 1.0, %v749
        %v751 = vmul.f32 %v489, %v704
        %v752 = vmul.f32 %v494, %v706
        %v753 = vmul.f32 %v499, %v708
        %v754 = vmul.f32 %v504, %v710
        %v755 = vmul.f32 %v509, %v712
        %v756 = vmul.f32 %v514, %v714
        %v757 = vmul.f32 %v519, %v716
        %v758 = vmul.f32 %v524, %v718
        %v759 = vmul.f32 %v529, %v720
        %v760 = vmul.f32 %v534, %v722
        %v761 = vmul.f32 %v539, %v724
        %v762 = vmul.f32 %v544, %v726
        %v763 = vmul.f32 %v549, %v728
        %v764 = vmul.f32 %v554, %v730
        %v765 = vmul.f32 %v559, %v732
        %v766 = vmul.f32 %v564, %v734
        %v767 = vmul.f32 %v569, %v736
        %v768 = vmul.f32 %v574, %v738
        %v769 = vmul.f32 %v579, %v740
        %v770 = vmul.f32 %v584, %v742
        %v771 = vmul.f32 %v589, %v744
        %v772 = vmul.f32 %v594, %v746
        %v773 = vmul.f32 %v599, %v748
        %v774 = vmul.f32 %v604, %v750
        %s775 = ssub.s32 %s310, 2
        %v776 = vstv %s775
        %v777 = vadd.s32 %v776, 1
        %v778 = vadd.s32 %v776, 2
        %v779 = vadd.s32 %v776, 3
        %v780 = vadd.s32 %v776, 4
        %v781 = vadd.s32 %v776, 5
        %v782 = vadd.s32 %v776, 6
        %v783 = vadd.s32 %v776, 7
        %v784 = vadd.s32 %v776, 8
        %v785 = vadd.s32 %v776, 9
        %v786 = vadd.s32 %v776, 10
        %v787 = vadd.s32 %v776, 11
        %vm788 = vcmp.ge.s32.totalorder %v776, 0
        %vm789 = vcmp.ge.s32.totalorder %v777, 0
        %vm790 = vcmp.ge.s32.totalorder %v778, 0
        %vm791 = vcmp.ge.s32.totalorder %v779, 0
        %vm792 = vcmp.ge.s32.totalorder %v780, 0
        %vm793 = vcmp.ge.s32.totalorder %v781, 0
        %vm794 = vcmp.ge.s32.totalorder %v782, 0
        %vm795 = vcmp.ge.s32.totalorder %v783, 0
        %vm796 = vcmp.ge.s32.totalorder %v784, 0
        %vm797 = vcmp.ge.s32.totalorder %v785, 0
        %vm798 = vcmp.ge.s32.totalorder %v786, 0
        %vm799 = vcmp.ge.s32.totalorder %v787, 0
        %vm800 = vcmp.lt.s32.totalorder %v776, 16
        %vm801 = vcmp.lt.s32.totalorder %v777, 16
        %vm802 = vcmp.lt.s32.totalorder %v778, 16
        %vm803 = vcmp.lt.s32.totalorder %v779, 16
        %vm804 = vcmp.lt.s32.totalorder %v780, 16
        %vm805 = vcmp.lt.s32.totalorder %v781, 16
        %vm806 = vcmp.lt.s32.totalorder %v782, 16
        %vm807 = vcmp.lt.s32.totalorder %v783, 16
        %vm808 = vcmp.lt.s32.totalorder %v784, 16
        %vm809 = vcmp.lt.s32.totalorder %v785, 16
        %vm810 = vcmp.lt.s32.totalorder %v786, 16
        %vm811 = vcmp.lt.s32.totalorder %v787, 16
        %vm812 = vmand %vm788, %vm800
        %vm813 = vmand %vm789, %vm801
        %vm814 = vmand %vm790, %vm802
        %vm815 = vmand %vm791, %vm803
        %vm816 = vmand %vm792, %vm804
        %vm817 = vmand %vm793, %vm805
        %vm818 = vmand %vm794, %vm806
        %vm819 = vmand %vm795, %vm807
        %vm820 = vmand %vm796, %vm808
        %vm821 = vmand %vm797, %vm809
        %vm822 = vmand %vm798, %vm810
        %vm823 = vmand %vm799, %vm811
        %v824 = vsel %vm812, 1, 0
        %v825 = vsel %vm813, 1, 0
        %v826 = vsel %vm814, 1, 0
        %v827 = vsel %vm815, 1, 0
        %v828 = vsel %vm816, 1, 0
        %v829 = vsel %vm817, 1, 0
        %v830 = vsel %vm818, 1, 0
        %v831 = vsel %vm819, 1, 0
        %v832 = vsel %vm820, 1, 0
        %v833 = vsel %vm821, 1, 0
        %v834 = vsel %vm822, 1, 0
        %v835 = vsel %vm823, 1, 0
        %vm836 = vcmp.eq.s32.totalorder %v824, 1
        %vm837 = vcmp.eq.s32.totalorder %v825, 1
        %vm838 = vcmp.eq.s32.totalorder %v826, 1
        %vm839 = vcmp.eq.s32.totalorder %v827, 1
        %vm840 = vcmp.eq.s32.totalorder %v828, 1
        %vm841 = vcmp.eq.s32.totalorder %v829, 1
        %vm842 = vcmp.eq.s32.totalorder %v830, 1
        %vm843 = vcmp.eq.s32.totalorder %v831, 1
        %vm844 = vcmp.eq.s32.totalorder %v832, 1
        %vm845 = vcmp.eq.s32.totalorder %v833, 1
        %vm846 = vcmp.eq.s32.totalorder %v834, 1
        %vm847 = vcmp.eq.s32.totalorder %v835, 1
        %v848 = vsel %vm836, %v751, 0.0
        %v849 = vsel %vm836, %v752, 0.0
        %v850 = vsel %vm837, %v753, 0.0
        %v851 = vsel %vm837, %v754, 0.0
        %v852 = vsel %vm838, %v755, 0.0
        %v853 = vsel %vm838, %v756, 0.0
        %v854 = vsel %vm839, %v757, 0.0
        %v855 = vsel %vm839, %v758, 0.0
        %v856 = vsel %vm840, %v759, 0.0
        %v857 = vsel %vm840, %v760, 0.0
        %v858 = vsel %vm841, %v761, 0.0
        %v859 = vsel %vm841, %v762, 0.0
        %v860 = vsel %vm842, %v763, 0.0
        %v861 = vsel %vm842, %v764, 0.0
        %v862 = vsel %vm843, %v765, 0.0
        %v863 = vsel %vm843, %v766, 0.0
        %v864 = vsel %vm844, %v767, 0.0
        %v865 = vsel %vm844, %v768, 0.0
        %v866 = vsel %vm845, %v769, 0.0
        %v867 = vsel %vm845, %v770, 0.0
        %v868 = vsel %vm846, %v771, 0.0
        %v869 = vsel %vm846, %v772, 0.0
        %v870 = vsel %vm847, %v773, 0.0
        %v871 = vsel %vm847, %v774, 0.0
        %vm872 = vcmask 25600
        %873 = vst.msk [vmem:[#allocation2] sm:$0x3] %vm872, 0.0
        %874 = vst.msk [vmem:[#allocation2 + $0x18] sm:$0x3] %vm872, 0.0
        %875 = vst.msk [vmem:[#allocation2 + $0x30] sm:$0x3] %vm872, 0.0
        %876 = vst.msk [vmem:[#allocation2 + $0x48] sm:$0x3] %vm872, 0.0
        %877 = vst.msk [vmem:[#allocation2 + $0x60] sm:$0x3] %vm872, 0.0
        %878 = vst.msk [vmem:[#allocation2 + $0x78] sm:$0x3] %vm872, 0.0
        %879 = vst.msk [vmem:[#allocation2 + $0x90] sm:$0x3] %vm872, 0.0
        %880 = vst.msk [vmem:[#allocation2 + $0xa8] sm:$0x3] %vm872, 0.0
        %881 = vst.msk [vmem:[#allocation2 + $0xc0] sm:$0x3] %vm872, 0.0
        %882 = vst.msk [vmem:[#allocation2 + $0xd8] sm:$0x3] %vm872, 0.0
        %883 = vst.msk [vmem:[#allocation2 + $0xf0] sm:$0x3] %vm872, 0.0
        %884 = vst.msk [vmem:[#allocation2 + $0x108] sm:$0x3] %vm872, 0.0
        %vm885 = vcmask 29696
        %886 = vst.msk [vmem:[#allocation2 + $0x12] sm:$0x3f] %vm885, 0.0
        %887 = vst.msk [vmem:[#allocation2 + $0x2a] sm:$0x3f] %vm885, 0.0
        %888 = vst.msk [vmem:[#allocation2 + $0x42] sm:$0x3f] %vm885, 0.0
        %889 = vst.msk [vmem:[#allocation2 + $0x5a] sm:$0x3f] %vm885, 0.0
        %890 = vst.msk [vmem:[#allocation2 + $0x72] sm:$0x3f] %vm885, 0.0
        %891 = vst.msk [vmem:[#allocation2 + $0x8a] sm:$0x3f] %vm885, 0.0
        %892 = vst.msk [vmem:[#allocation2 + $0xa2] sm:$0x3f] %vm885, 0.0
        %893 = vst.msk [vmem:[#allocation2 + $0xba] sm:$0x3f] %vm885, 0.0
        %894 = vst.msk [vmem:[#allocation2 + $0xd2] sm:$0x3f] %vm885, 0.0
        %895 = vst.msk [vmem:[#allocation2 + $0xea] sm:$0x3f] %vm885, 0.0
        %896 = vst.msk [vmem:[#allocation2 + $0x102] sm:$0x3f] %vm885, 0.0
        %897 = vst.msk [vmem:[#allocation2 + $0x11a] sm:$0x3f] %vm885, 0.0
        %898 = vst.msk [vmem:[#allocation2 + $0x2] sm:$0xff] %vm345, %v848
        %899 = vst.msk [vmem:[#allocation2 + $0xa] sm:$0xff] %vm345, %v849
        %900 = vst.msk [vmem:[#allocation2 + $0x1a] sm:$0xff] %vm345, %v850
        %901 = vst.msk [vmem:[#allocation2 + $0x22] sm:$0xff] %vm345, %v851
        %902 = vst.msk [vmem:[#allocation2 + $0x32] sm:$0xff] %vm345, %v852
        %903 = vst.msk [vmem:[#allocation2 + $0x3a] sm:$0xff] %vm345, %v853
        %904 = vst.msk [vmem:[#allocation2 + $0x4a] sm:$0xff] %vm345, %v854
        %905 = vst.msk [vmem:[#allocation2 + $0x52] sm:$0xff] %vm345, %v855
        %906 = vst.msk [vmem:[#allocation2 + $0x62] sm:$0xff] %vm345, %v856
        %907 = vst.msk [vmem:[#allocation2 + $0x6a] sm:$0xff] %vm345, %v857
        %908 = vst.msk [vmem:[#allocation2 + $0x7a] sm:$0xff] %vm345, %v858
        %909 = vst.msk [vmem:[#allocation2 + $0x82] sm:$0xff] %vm345, %v859
        %910 = vst.msk [vmem:[#allocation2 + $0x92] sm:$0xff] %vm345, %v860
        %911 = vst.msk [vmem:[#allocation2 + $0x9a] sm:$0xff] %vm345, %v861
        %912 = vst.msk [vmem:[#allocation2 + $0xaa] sm:$0xff] %vm345, %v862
        %913 = vst.msk [vmem:[#allocation2 + $0xb2] sm:$0xff] %vm345, %v863
        %914 = vst.msk [vmem:[#allocation2 + $0xc2] sm:$0xff] %vm345, %v864
        %915 = vst.msk [vmem:[#allocation2 + $0xca] sm:$0xff] %vm345, %v865
        %916 = vst.msk [vmem:[#allocation2 + $0xda] sm:$0xff] %vm345, %v866
        %917 = vst.msk [vmem:[#allocation2 + $0xe2] sm:$0xff] %vm345, %v867
        %918 = vst.msk [vmem:[#allocation2 + $0xf2] sm:$0xff] %vm345, %v868
        %919 = vst.msk [vmem:[#allocation2 + $0xfa] sm:$0xff] %vm345, %v869
        %920 = vst.msk [vmem:[#allocation2 + $0x10a] sm:$0xff] %vm345, %v870
        %921 = vst.msk [vmem:[#allocation2 + $0x112] sm:$0xff] %vm345, %v871
        %v922 = vld [vmem:[#allocation9] sm:$0xff]
        %v923 = vld [vmem:[#allocation9 + $0x8] sm:$0xff]
        %v924 = vld [vmem:[#allocation9 + $0x10] sm:$0xff]
        %v925 = vld [vmem:[#allocation9 + $0x18] sm:$0x1]
        %v926 = vld [vmem:[#allocation11] sm:$0x1]
        %v927 = vld [vmem:[#allocation2] sm:$0xff]
        %v928 = vld [vmem:[#allocation2 + $0x8] sm:$0xff]
        %v929 = vld [vmem:[#allocation2 + $0x10] sm:$0xff]
        %v930 = vld [vmem:[#allocation2 + $0x18] sm:$0xff]
        %v931 = vld [vmem:[#allocation2 + $0x20] sm:$0xff]
        %v932 = vld [vmem:[#allocation2 + $0x28] sm:$0xff]
        %v933 = vld [vmem:[#allocation2 + $0x30] sm:$0xff]
        %v934 = vld [vmem:[#allocation2 + $0x38] sm:$0xff]
        %v935 = vld [vmem:[#allocation2 + $0x40] sm:$0xff]
        %v936 = vld [vmem:[#allocation2 + $0x48] sm:$0xff]
        %v937 = vld [vmem:[#allocation2 + $0x50] sm:$0xff]
        %v938 = vld [vmem:[#allocation2 + $0x58] sm:$0xff]
        %v939 = vld [vmem:[#allocation2 + $0x60] sm:$0xff]
        %v940 = vld [vmem:[#allocation2 + $0x68] sm:$0xff]
        %v941 = vld [vmem:[#allocation2 + $0x70] sm:$0xff]
        %v942 = vld [vmem:[#allocation2 + $0x78] sm:$0xff]
        %v943 = vld [vmem:[#allocation2 + $0x80] sm:$0xff]
        %v944 = vld [vmem:[#allocation2 + $0x88] sm:$0xff]
        %v945 = vld [vmem:[#allocation2 + $0x90] sm:$0xff]
        %v946 = vld [vmem:[#allocation2 + $0x98] sm:$0xff]
        %v947 = vld [vmem:[#allocation2 + $0xa0] sm:$0xff]
        %v948 = vld [vmem:[#allocation2 + $0xa8] sm:$0xff]
        %v949 = vld [vmem:[#allocation2 + $0xb0] sm:$0xff]
        %v950 = vld [vmem:[#allocation2 + $0xb8] sm:$0xff]
        %v951 = vld [vmem:[#allocation2 + $0xc0] sm:$0xff]
        %v952 = vld [vmem:[#allocation2 + $0xc8] sm:$0xff]
        %v953 = vld [vmem:[#allocation2 + $0xd0] sm:$0xff]
        %v954 = vld [vmem:[#allocation2 + $0xd8] sm:$0xff]
        %v955 = vld [vmem:[#allocation2 + $0xe0] sm:$0xff]
        %v956 = vld [vmem:[#allocation2 + $0xe8] sm:$0xff]
        %v957 = vld [vmem:[#allocation2 + $0xf0] sm:$0xff]
        %v958 = vld [vmem:[#allocation2 + $0xf8] sm:$0xff]
        %v959 = vld [vmem:[#allocation2 + $0x100] sm:$0xff]
        %v960 = vld [vmem:[#allocation2 + $0x108] sm:$0xff]
        %v961 = vld [vmem:[#allocation2 + $0x110] sm:$0xff]
        %v962 = vld [vmem:[#allocation2 + $0x118] sm:$0xff]
        %v963 = vrot.slane %v927, 1
        %v964 = vrot.slane %v930, 1
        %v965 = vrot.slane %v933, 1
        %v966 = vrot.slane %v936, 1
        %v967 = vrot.slane %v939, 1
        %v968 = vrot.slane %v942, 1
        %v969 = vrot.slane %v945, 1
        %v970 = vrot.slane %v948, 1
        %v971 = vrot.slane %v951, 1
        %v972 = vrot.slane %v954, 1
        %v973 = vrot.slane %v957, 1
        %v974 = vrot.slane %v960, 1
        %v975 = vrot.slane %v928, 1
        %v976 = vrot.slane %v931, 1
        %v977 = vrot.slane %v934, 1
        %v978 = vrot.slane %v937, 1
        %v979 = vrot.slane %v940, 1
        %v980 = vrot.slane %v943, 1
        %v981 = vrot.slane %v946, 1
        %v982 = vrot.slane %v949, 1
        %v983 = vrot.slane %v952, 1
        %v984 = vrot.slane %v955, 1
        %v985 = vrot.slane %v958, 1
        %v986 = vrot.slane %v961, 1
        %v987 = vrot.slane %v929, 1
        %v988 = vrot.slane %v932, 1
        %v989 = vrot.slane %v935, 1
        %v990 = vrot.slane %v938, 1
        %v991 = vrot.slane %v941, 1
        %v992 = vrot.slane %v944, 1
        %v993 = vrot.slane %v947, 1
        %v994 = vrot.slane %v950, 1
        %v995 = vrot.slane %v953, 1
        %v996 = vrot.slane %v956, 1
        %v997 = vrot.slane %v959, 1
        %v998 = vrot.slane %v962, 1
        %v999 = vlaneseq
        %v1000 = vshrl.u32 %v999, 7
        %vm1001 = vcmp.lt.s32.totalorder %v1000, 7
        %v1002 = vsel %vm1001, %v975, %v987
        %v1003 = vsel %vm1001, %v976, %v988
        %v1004 = vsel %vm1001, %v977, %v989
        %v1005 = vsel %vm1001, %v978, %v990
        %v1006 = vsel %vm1001, %v979, %v991
        %v1007 = vsel %vm1001, %v980, %v992
        %v1008 = vsel %vm1001, %v981, %v993
        %v1009 = vsel %vm1001, %v982, %v994
        %v1010 = vsel %vm1001, %v983, %v995
        %v1011 = vsel %vm1001, %v984, %v996
        %v1012 = vsel %vm1001, %v985, %v997
        %v1013 = vsel %vm1001, %v986, %v998
        %v1014 = vsel %vm1001, %v963, %v975
        %v1015 = vsel %vm1001, %v964, %v976
        %v1016 = vsel %vm1001, %v965, %v977
        %v1017 = vsel %vm1001, %v966, %v978
        %v1018 = vsel %vm1001, %v967, %v979
        %v1019 = vsel %vm1001, %v968, %v980
        %v1020 = vsel %vm1001, %v969, %v981
        %v1021 = vsel %vm1001, %v970, %v982
        %v1022 = vsel %vm1001, %v971, %v983
        %v1023 = vsel %vm1001, %v972, %v984
        %v1024 = vsel %vm1001, %v973, %v985
        %v1025 = vsel %vm1001, %v974, %v986
        %v1026 = vrot.slane %v927, 2
        %v1027 = vrot.slane %v930, 2
        %v1028 = vrot.slane %v933, 2
        %v1029 = vrot.slane %v936, 2
        %v1030 = vrot.slane %v939, 2
        %v1031 = vrot.slane %v942, 2
        %v1032 = vrot.slane %v945, 2
        %v1033 = vrot.slane %v948, 2
        %v1034 = vrot.slane %v951, 2
        %v1035 = vrot.slane %v954, 2
        %v1036 = vrot.slane %v957, 2
        %v1037 = vrot.slane %v960, 2
        %v1038 = vrot.slane %v928, 2
        %v1039 = vrot.slane %v931, 2
        %v1040 = vrot.slane %v934, 2
        %v1041 = vrot.slane %v937, 2
        %v1042 = vrot.slane %v940, 2
        %v1043 = vrot.slane %v943, 2
        %v1044 = vrot.slane %v946, 2
        %v1045 = vrot.slane %v949, 2
        %v1046 = vrot.slane %v952, 2
        %v1047 = vrot.slane %v955, 2
        %v1048 = vrot.slane %v958, 2
        %v1049 = vrot.slane %v961, 2
        %v1050 = vrot.slane %v929, 2
        %v1051 = vrot.slane %v932, 2
        %v1052 = vrot.slane %v935, 2
        %v1053 = vrot.slane %v938, 2
        %v1054 = vrot.slane %v941, 2
        %v1055 = vrot.slane %v944, 2
        %v1056 = vrot.slane %v947, 2
        %v1057 = vrot.slane %v950, 2
        %v1058 = vrot.slane %v953, 2
        %v1059 = vrot.slane %v956, 2
        %v1060 = vrot.slane %v959, 2
        %v1061 = vrot.slane %v962, 2
        %vm1062 = vcmp.lt.s32.totalorder %v1000, 6
        %v1063 = vsel %vm1062, %v1038, %v1050
        %v1064 = vsel %vm1062, %v1039, %v1051
        %v1065 = vsel %vm1062, %v1040, %v1052
        %v1066 = vsel %vm1062, %v1041, %v1053
        %v1067 = vsel %vm1062, %v1042, %v1054
        %v1068 = vsel %vm1062, %v1043, %v1055
        %v1069 = vsel %vm1062, %v1044, %v1056
        %v1070 = vsel %vm1062, %v1045, %v1057
        %v1071 = vsel %vm1062, %v1046, %v1058
        %v1072 = vsel %vm1062, %v1047, %v1059
        %v1073 = vsel %vm1062, %v1048, %v1060
        %v1074 = vsel %vm1062, %v1049, %v1061
        %v1075 = vsel %vm1062, %v1026, %v1038
        %v1076 = vsel %vm1062, %v1027, %v1039
        %v1077 = vsel %vm1062, %v1028, %v1040
        %v1078 = vsel %vm1062, %v1029, %v1041
        %v1079 = vsel %vm1062, %v1030, %v1042
        %v1080 = vsel %vm1062, %v1031, %v1043
        %v1081 = vsel %vm1062, %v1032, %v1044
        %v1082 = vsel %vm1062, %v1033, %v1045
        %v1083 = vsel %vm1062, %v1034, %v1046
        %v1084 = vsel %vm1062, %v1035, %v1047
        %v1085 = vsel %vm1062, %v1036, %v1048
        %v1086 = vsel %vm1062, %v1037, %v1049
        %v1087 = vrot.slane %v927, 3
        %v1088 = vrot.slane %v930, 3
        %v1089 = vrot.slane %v933, 3
        %v1090 = vrot.slane %v936, 3
        %v1091 = vrot.slane %v939, 3
        %v1092 = vrot.slane %v942, 3
        %v1093 = vrot.slane %v945, 3
        %v1094 = vrot.slane %v948, 3
        %v1095 = vrot.slane %v951, 3
        %v1096 = vrot.slane %v954, 3
        %v1097 = vrot.slane %v957, 3
        %v1098 = vrot.slane %v960, 3
        %v1099 = vrot.slane %v928, 3
        %v1100 = vrot.slane %v931, 3
        %v1101 = vrot.slane %v934, 3
        %v1102 = vrot.slane %v937, 3
        %v1103 = vrot.slane %v940, 3
        %v1104 = vrot.slane %v943, 3
        %v1105 = vrot.slane %v946, 3
        %v1106 = vrot.slane %v949, 3
        %v1107 = vrot.slane %v952, 3
        %v1108 = vrot.slane %v955, 3
        %v1109 = vrot.slane %v958, 3
        %v1110 = vrot.slane %v961, 3
        %v1111 = vrot.slane %v929, 3
        %v1112 = vrot.slane %v932, 3
        %v1113 = vrot.slane %v935, 3
        %v1114 = vrot.slane %v938, 3
        %v1115 = vrot.slane %v941, 3
        %v1116 = vrot.slane %v944, 3
        %v1117 = vrot.slane %v947, 3
        %v1118 = vrot.slane %v950, 3
        %v1119 = vrot.slane %v953, 3
        %v1120 = vrot.slane %v956, 3
        %v1121 = vrot.slane %v959, 3
        %v1122 = vrot.slane %v962, 3
        %vm1123 = vcmp.lt.s32.totalorder %v1000, 5
        %v1124 = vsel %vm1123, %v1099, %v1111
        %v1125 = vsel %vm1123, %v1100, %v1112
        %v1126 = vsel %vm1123, %v1101, %v1113
        %v1127 = vsel %vm1123, %v1102, %v1114
        %v1128 = vsel %vm1123, %v1103, %v1115
        %v1129 = vsel %vm1123, %v1104, %v1116
        %v1130 = vsel %vm1123, %v1105, %v1117
        %v1131 = vsel %vm1123, %v1106, %v1118
        %v1132 = vsel %vm1123, %v1107, %v1119
        %v1133 = vsel %vm1123, %v1108, %v1120
        %v1134 = vsel %vm1123, %v1109, %v1121
        %v1135 = vsel %vm1123, %v1110, %v1122
        %v1136 = vsel %vm1123, %v1087, %v1099
        %v1137 = vsel %vm1123, %v1088, %v1100
        %v1138 = vsel %vm1123, %v1089, %v1101
        %v1139 = vsel %vm1123, %v1090, %v1102
        %v1140 = vsel %vm1123, %v1091, %v1103
        %v1141 = vsel %vm1123, %v1092, %v1104
        %v1142 = vsel %vm1123, %v1093, %v1105
        %v1143 = vsel %vm1123, %v1094, %v1106
        %v1144 = vsel %vm1123, %v1095, %v1107
        %v1145 = vsel %vm1123, %v1096, %v1108
        %v1146 = vsel %vm1123, %v1097, %v1109
        %v1147 = vsel %vm1123, %v1098, %v1110
        %v1148 = vrot.slane %v927, 4
        %v1149 = vrot.slane %v930, 4
        %v1150 = vrot.slane %v933, 4
        %v1151 = vrot.slane %v936, 4
        %v1152 = vrot.slane %v939, 4
        %v1153 = vrot.slane %v942, 4
        %v1154 = vrot.slane %v945, 4
        %v1155 = vrot.slane %v948, 4
        %v1156 = vrot.slane %v951, 4
        %v1157 = vrot.slane %v954, 4
        %v1158 = vrot.slane %v957, 4
        %v1159 = vrot.slane %v960, 4
        %v1160 = vrot.slane %v928, 4
        %v1161 = vrot.slane %v931, 4
        %v1162 = vrot.slane %v934, 4
        %v1163 = vrot.slane %v937, 4
        %v1164 = vrot.slane %v940, 4
        %v1165 = vrot.slane %v943, 4
        %v1166 = vrot.slane %v946, 4
        %v1167 = vrot.slane %v949, 4
        %v1168 = vrot.slane %v952, 4
        %v1169 = vrot.slane %v955, 4
        %v1170 = vrot.slane %v958, 4
        %v1171 = vrot.slane %v961, 4
        %v1172 = vrot.slane %v929, 4
        %v1173 = vrot.slane %v932, 4
        %v1174 = vrot.slane %v935, 4
        %v1175 = vrot.slane %v938, 4
        %v1176 = vrot.slane %v941, 4
        %v1177 = vrot.slane %v944, 4
        %v1178 = vrot.slane %v947, 4
        %v1179 = vrot.slane %v950, 4
        %v1180 = vrot.slane %v953, 4
        %v1181 = vrot.slane %v956, 4
        %v1182 = vrot.slane %v959, 4
        %v1183 = vrot.slane %v962, 4
        %vm1184 = vcmp.lt.s32.totalorder %v1000, 4
        %v1185 = vsel %vm1184, %v1160, %v1172
        %v1186 = vsel %vm1184, %v1161, %v1173
        %v1187 = vsel %vm1184, %v1162, %v1174
        %v1188 = vsel %vm1184, %v1163, %v1175
        %v1189 = vsel %vm1184, %v1164, %v1176
        %v1190 = vsel %vm1184, %v1165, %v1177
        %v1191 = vsel %vm1184, %v1166, %v1178
        %v1192 = vsel %vm1184, %v1167, %v1179
        %v1193 = vsel %vm1184, %v1168, %v1180
        %v1194 = vsel %vm1184, %v1169, %v1181
        %v1195 = vsel %vm1184, %v1170, %v1182
        %v1196 = vsel %vm1184, %v1171, %v1183
        %v1197 = vsel %vm1184, %v1148, %v1160
        %v1198 = vsel %vm1184, %v1149, %v1161
        %v1199 = vsel %vm1184, %v1150, %v1162
        %v1200 = vsel %vm1184, %v1151, %v1163
        %v1201 = vsel %vm1184, %v1152, %v1164
        %v1202 = vsel %vm1184, %v1153, %v1165
        %v1203 = vsel %vm1184, %v1154, %v1166
        %v1204 = vsel %vm1184, %v1155, %v1167
        %v1205 = vsel %vm1184, %v1156, %v1168
        %v1206 = vsel %vm1184, %v1157, %v1169
        %v1207 = vsel %vm1184, %v1158, %v1170
        %v1208 = vsel %vm1184, %v1159, %v1171
        %v1210 = vlaneseq
        %v1211 = vshrl.u32 %v1210, 7
        %v1212 = vsub.s32 0, %v1211
        %v1213 = vrot.slane %v926, %v1212
        %v1215 = vlaneseq
        %v1216 = vshrl.u32 %v1215, 7
        %v1217 = vsub.s32 0, %v1216
        %v1218 = vrot.slane %v922, %v1217
        %v1219 = vmul.f32 %v927, %v1218
        %v1220 = vmul.f32 %v928, %v1218
        %v1221 = vmul.f32 %v930, %v1218
        %v1222 = vmul.f32 %v931, %v1218
        %v1223 = vmul.f32 %v933, %v1218
        %v1224 = vmul.f32 %v934, %v1218
        %v1225 = vmul.f32 %v936, %v1218
        %v1226 = vmul.f32 %v937, %v1218
        %v1227 = vmul.f32 %v939, %v1218
        %v1228 = vmul.f32 %v940, %v1218
        %v1229 = vmul.f32 %v942, %v1218
        %v1230 = vmul.f32 %v943, %v1218
        %v1231 = vmul.f32 %v945, %v1218
        %v1232 = vmul.f32 %v946, %v1218
        %v1233 = vmul.f32 %v948, %v1218
        %v1234 = vmul.f32 %v949, %v1218
        %v1235 = vadd.f32 %v1213, %v1219
        %v1236 = vadd.f32 %v1213, %v1220
        %v1237 = vadd.f32 %v1213, %v1221
        %v1238 = vadd.f32 %v1213, %v1222
        %v1239 = vadd.f32 %v1213, %v1223
        %v1240 = vadd.f32 %v1213, %v1224
        %v1241 = vadd.f32 %v1213, %v1225
        %v1242 = vadd.f32 %v1213, %v1226
        %v1243 = vadd.f32 %v1213, %v1227
        %v1244 = vadd.f32 %v1213, %v1228
        %v1245 = vadd.f32 %v1213, %v1229
        %v1246 = vadd.f32 %v1213, %v1230
        %v1247 = vadd.f32 %v1213, %v1231
        %v1248 = vadd.f32 %v1213, %v1232
        %v1249 = vadd.f32 %v1213, %v1233
        %v1250 = vadd.f32 %v1213, %v1234
        %v1251 = vlaneseq
        %v1252 = vshrl.u32 %v1251, 7
        %v1253 = vsub.s32 1, %v1252
        %v1254 = vrot.slane %v922, %v1253
        %v1255 = vmul.f32 %v1014, %v1254
        %v1256 = vmul.f32 %v1002, %v1254
        %v1257 = vmul.f32 %v1015, %v1254
        %v1258 = vmul.f32 %v1003, %v1254
        %v1259 = vmul.f32 %v1016, %v1254
        %v1260 = vmul.f32 %v1004, %v1254
        %v1261 = vmul.f32 %v1017, %v1254
        %v1262 = vmul.f32 %v1005, %v1254
        %v1263 = vmul.f32 %v1018, %v1254
        %v1264 = vmul.f32 %v1006, %v1254
        %v1265 = vmul.f32 %v1019, %v1254
        %v1266 = vmul.f32 %v1007, %v1254
        %v1267 = vmul.f32 %v1020, %v1254
        %v1268 = vmul.f32 %v1008, %v1254
        %v1269 = vmul.f32 %v1021, %v1254
        %v1270 = vmul.f32 %v1009, %v1254
        %v1271 = vadd.f32 %v1235, %v1255
        %v1272 = vadd.f32 %v1236, %v1256
        %v1273 = vadd.f32 %v1237, %v1257
        %v1274 = vadd.f32 %v1238, %v1258
        %v1275 = vadd.f32 %v1239, %v1259
        %v1276 = vadd.f32 %v1240, %v1260
        %v1277 = vadd.f32 %v1241, %v1261
        %v1278 = vadd.f32 %v1242, %v1262
        %v1279 = vadd.f32 %v1243, %v1263
        %v1280 = vadd.f32 %v1244, %v1264
        %v1281 = vadd.f32 %v1245, %v1265
        %v1282 = vadd.f32 %v1246, %v1266
        %v1283 = vadd.f32 %v1247, %v1267
        %v1284 = vadd.f32 %v1248, %v1268
        %v1285 = vadd.f32 %v1249, %v1269
        %v1286 = vadd.f32 %v1250, %v1270
        %v1287 = vlaneseq
        %v1288 = vshrl.u32 %v1287, 7
        %v1289 = vsub.s32 2, %v1288
        %v1290 = vrot.slane %v922, %v1289
        %v1291 = vmul.f32 %v1075, %v1290
        %v1292 = vmul.f32 %v1063, %v1290
        %v1293 = vmul.f32 %v1076, %v1290
        %v1294 = vmul.f32 %v1064, %v1290
        %v1295 = vmul.f32 %v1077, %v1290
        %v1296 = vmul.f32 %v1065, %v1290
        %v1297 = vmul.f32 %v1078, %v1290
        %v1298 = vmul.f32 %v1066, %v1290
        %v1299 = vmul.f32 %v1079, %v1290
        %v1300 = vmul.f32 %v1067, %v1290
        %v1301 = vmul.f32 %v1080, %v1290
        %v1302 = vmul.f32 %v1068, %v1290
        %v1303 = vmul.f32 %v1081, %v1290
        %v1304 = vmul.f32 %v1069, %v1290
        %v1305 = vmul.f32 %v1082, %v1290
        %v1306 = vmul.f32 %v1070, %v1290
        %v1307 = vadd.f32 %v1271, %v1291
        %v1308 = vadd.f32 %v1272, %v1292
        %v1309 = vadd.f32 %v1273, %v1293
        %v1310 = vadd.f32 %v1274, %v1294
        %v1311 = vadd.f32 %v1275, %v1295
        %v1312 = vadd.f32 %v1276, %v1296
        %v1313 = vadd.f32 %v1277, %v1297
        %v1314 = vadd.f32 %v1278, %v1298
        %v1315 = vadd.f32 %v1279, %v1299
        %v1316 = vadd.f32 %v1280, %v1300
        %v1317 = vadd.f32 %v1281, %v1301
        %v1318 = vadd.f32 %v1282, %v1302
        %v1319 = vadd.f32 %v1283, %v1303
        %v1320 = vadd.f32 %v1284, %v1304
        %v1321 = vadd.f32 %v1285, %v1305
        %v1322 = vadd.f32 %v1286, %v1306
        %v1323 = vlaneseq
        %v1324 = vshrl.u32 %v1323, 7
        %v1325 = vsub.s32 3, %v1324
        %v1326 = vrot.slane %v922, %v1325
        %v1327 = vmul.f32 %v1136, %v1326
        %v1328 = vmul.f32 %v1124, %v1326
        %v1329 = vmul.f32 %v1137, %v1326
        %v1330 = vmul.f32 %v1125, %v1326
        %v1331 = vmul.f32 %v1138, %v1326
        %v1332 = vmul.f32 %v1126, %v1326
        %v1333 = vmul.f32 %v1139, %v1326
        %v1334 = vmul.f32 %v1127, %v1326
        %v1335 = vmul.f32 %v1140, %v1326
        %v1336 = vmul.f32 %v1128, %v1326
        %v1337 = vmul.f32 %v1141, %v1326
        %v1338 = vmul.f32 %v1129, %v1326
        %v1339 = vmul.f32 %v1142, %v1326
        %v1340 = vmul.f32 %v1130, %v1326
        %v1341 = vmul.f32 %v1143, %v1326
        %v1342 = vmul.f32 %v1131, %v1326
        %v1343 = vadd.f32 %v1307, %v1327
        %v1344 = vadd.f32 %v1308, %v1328
        %v1345 = vadd.f32 %v1309, %v1329
        %v1346 = vadd.f32 %v1310, %v1330
        %v1347 = vadd.f32 %v1311, %v1331
        %v1348 = vadd.f32 %v1312, %v1332
        %v1349 = vadd.f32 %v1313, %v1333
        %v1350 = vadd.f32 %v1314, %v1334
        %v1351 = vadd.f32 %v1315, %v1335
        %v1352 = vadd.f32 %v1316, %v1336
        %v1353 = vadd.f32 %v1317, %v1337
        %v1354 = vadd.f32 %v1318, %v1338
        %v1355 = vadd.f32 %v1319, %v1339
        %v1356 = vadd.f32 %v1320, %v1340
        %v1357 = vadd.f32 %v1321, %v1341
        %v1358 = vadd.f32 %v1322, %v1342
        %v1359 = vlaneseq
        %v1360 = vshrl.u32 %v1359, 7
        %v1361 = vsub.s32 4, %v1360
        %v1362 = vrot.slane %v922, %v1361
        %v1363 = vmul.f32 %v1197, %v1362
        %v1364 = vmul.f32 %v1185, %v1362
        %v1365 = vmul.f32 %v1198, %v1362
        %v1366 = vmul.f32 %v1186, %v1362
        %v1367 = vmul.f32 %v1199, %v1362
        %v1368 = vmul.f32 %v1187, %v1362
        %v1369 = vmul.f32 %v1200, %v1362
        %v1370 = vmul.f32 %v1188, %v1362
        %v1371 = vmul.f32 %v1201, %v1362
        %v1372 = vmul.f32 %v1189, %v1362
        %v1373 = vmul.f32 %v1202, %v1362
        %v1374 = vmul.f32 %v1190, %v1362
        %v1375 = vmul.f32 %v1203, %v1362
        %v1376 = vmul.f32 %v1191, %v1362
        %v1377 = vmul.f32 %v1204, %v1362
        %v1378 = vmul.f32 %v1192, %v1362
        %v1379 = vadd.f32 %v1343, %v1363
        %v1380 = vadd.f32 %v1344, %v1364
        %v1381 = vadd.f32 %v1345, %v1365
        %v1382 = vadd.f32 %v1346, %v1366
        %v1383 = vadd.f32 %v1347, %v1367
        %v1384 = vadd.f32 %v1348, %v1368
        %v1385 = vadd.f32 %v1349, %v1369
        %v1386 = vadd.f32 %v1350, %v1370
        %v1387 = vadd.f32 %v1351, %v1371
        %v1388 = vadd.f32 %v1352, %v1372
        %v1389 = vadd.f32 %v1353, %v1373
        %v1390 = vadd.f32 %v1354, %v1374
        %v1391 = vadd.f32 %v1355, %v1375
        %v1392 = vadd.f32 %v1356, %v1376
        %v1393 = vadd.f32 %v1357, %v1377
        %v1394 = vadd.f32 %v1358, %v1378
        %v1395 = vlaneseq
        %v1396 = vshrl.u32 %v1395, 7
        %v1397 = vsub.s32 5, %v1396
        %v1398 = vrot.slane %v922, %v1397
        %v1399 = vmul.f32 %v930, %v1398
        %v1400 = vmul.f32 %v931, %v1398
        %v1401 = vmul.f32 %v933, %v1398
        %v1402 = vmul.f32 %v934, %v1398
        %v1403 = vmul.f32 %v936, %v1398
        %v1404 = vmul.f32 %v937, %v1398
        %v1405 = vmul.f32 %v939, %v1398
        %v1406 = vmul.f32 %v940, %v1398
        %v1407 = vmul.f32 %v942, %v1398
        %v1408 = vmul.f32 %v943, %v1398
        %v1409 = vmul.f32 %v945, %v1398
        %v1410 = vmul.f32 %v946, %v1398
        %v1411 = vmul.f32 %v948, %v1398
        %v1412 = vmul.f32 %v949, %v1398
        %v1413 = vmul.f32 %v951, %v1398
        %v1414 = vmul.f32 %v952, %v1398
        %v1415 = vadd.f32 %v1379, %v1399
        %v1416 = vadd.f32 %v1380, %v1400
        %v1417 = vadd.f32 %v1381, %v1401
        %v1418 = vadd.f32 %v1382, %v1402
        %v1419 = vadd.f32 %v1383, %v1403
        %v1420 = vadd.f32 %v1384, %v1404
        %v1421 = vadd.f32 %v1385, %v1405
        %v1422 = vadd.f32 %v1386, %v1406
        %v1423 = vadd.f32 %v1387, %v1407
        %v1424 = vadd.f32 %v1388, %v1408
        %v1425 = vadd.f32 %v1389, %v1409
        %v1426 = vadd.f32 %v1390, %v1410
        %v1427 = vadd.f32 %v1391, %v1411
        %v1428 = vadd.f32 %v1392, %v1412
        %v1429 = vadd.f32 %v1393, %v1413
        %v1430 = vadd.f32 %v1394, %v1414
        %v1431 = vlaneseq
        %v1432 = vshrl.u32 %v1431, 7
        %v1433 = vsub.s32 6, %v1432
        %v1434 = vrot.slane %v922, %v1433
        %v1435 = vmul.f32 %v1015, %v1434
        %v1436 = vmul.f32 %v1003, %v1434
        %v1437 = vmul.f32 %v1016, %v1434
        %v1438 = vmul.f32 %v1004, %v1434
        %v1439 = vmul.f32 %v1017, %v1434
        %v1440 = vmul.f32 %v1005, %v1434
        %v1441 = vmul.f32 %v1018, %v1434
        %v1442 = vmul.f32 %v1006, %v1434
        %v1443 = vmul.f32 %v1019, %v1434
        %v1444 = vmul.f32 %v1007, %v1434
        %v1445 = vmul.f32 %v1020, %v1434
        %v1446 = vmul.f32 %v1008, %v1434
        %v1447 = vmul.f32 %v1021, %v1434
        %v1448 = vmul.f32 %v1009, %v1434
        %v1449 = vmul.f32 %v1022, %v1434
        %v1450 = vmul.f32 %v1010, %v1434
        %v1451 = vadd.f32 %v1415, %v1435
        %v1452 = vadd.f32 %v1416, %v1436
        %v1453 = vadd.f32 %v1417, %v1437
        %v1454 = vadd.f32 %v1418, %v1438
        %v1455 = vadd.f32 %v1419, %v1439
        %v1456 = vadd.f32 %v1420, %v1440
        %v1457 = vadd.f32 %v1421, %v1441
        %v1458 = vadd.f32 %v1422, %v1442
        %v1459 = vadd.f32 %v1423, %v1443
        %v1460 = vadd.f32 %v1424, %v1444
        %v1461 = vadd.f32 %v1425, %v1445
        %v1462 = vadd.f32 %v1426, %v1446
        %v1463 = vadd.f32 %v1427, %v1447
        %v1464 = vadd.f32 %v1428, %v1448
        %v1465 = vadd.f32 %v1429, %v1449
        %v1466 = vadd.f32 %v1430, %v1450
        %v1467 = vlaneseq
        %v1468 = vshrl.u32 %v1467, 7
        %v1469 = vsub.s32 7, %v1468
        %v1470 = vrot.slane %v922, %v1469
        %v1471 = vmul.f32 %v1076, %v1470
        %v1472 = vmul.f32 %v1064, %v1470
        %v1473 = vmul.f32 %v1077, %v1470
        %v1474 = vmul.f32 %v1065, %v1470
        %v1475 = vmul.f32 %v1078, %v1470
        %v1476 = vmul.f32 %v1066, %v1470
        %v1477 = vmul.f32 %v1079, %v1470
        %v1478 = vmul.f32 %v1067, %v1470
        %v1479 = vmul.f32 %v1080, %v1470
        %v1480 = vmul.f32 %v1068, %v1470
        %v1481 = vmul.f32 %v1081, %v1470
        %v1482 = vmul.f32 %v1069, %v1470
        %v1483 = vmul.f32 %v1082, %v1470
        %v1484 = vmul.f32 %v1070, %v1470
        %v1485 = vmul.f32 %v1083, %v1470
        %v1486 = vmul.f32 %v1071, %v1470
        %v1487 = vadd.f32 %v1451, %v1471
        %v1488 = vadd.f32 %v1452, %v1472
        %v1489 = vadd.f32 %v1453, %v1473
        %v1490 = vadd.f32 %v1454, %v1474
        %v1491 = vadd.f32 %v1455, %v1475
        %v1492 = vadd.f32 %v1456, %v1476
        %v1493 = vadd.f32 %v1457, %v1477
        %v1494 = vadd.f32 %v1458, %v1478
        %v1495 = vadd.f32 %v1459, %v1479
        %v1496 = vadd.f32 %v1460, %v1480
        %v1497 = vadd.f32 %v1461, %v1481
        %v1498 = vadd.f32 %v1462, %v1482
        %v1499 = vadd.f32 %v1463, %v1483
        %v1500 = vadd.f32 %v1464, %v1484
        %v1501 = vadd.f32 %v1465, %v1485
        %v1502 = vadd.f32 %v1466, %v1486
        %v1503 = vlaneseq
        %v1504 = vshrl.u32 %v1503, 7
        %v1505 = vsub.s32 0, %v1504
        %v1506 = vrot.slane %v923, %v1505
        %v1507 = vmul.f32 %v1137, %v1506
        %v1508 = vmul.f32 %v1125, %v1506
        %v1509 = vmul.f32 %v1138, %v1506
        %v1510 = vmul.f32 %v1126, %v1506
        %v1511 = vmul.f32 %v1139, %v1506
        %v1512 = vmul.f32 %v1127, %v1506
        %v1513 = vmul.f32 %v1140, %v1506
        %v1514 = vmul.f32 %v1128, %v1506
        %v1515 = vmul.f32 %v1141, %v1506
        %v1516 = vmul.f32 %v1129, %v1506
        %v1517 = vmul.f32 %v1142, %v1506
        %v1518 = vmul.f32 %v1130, %v1506
        %v1519 = vmul.f32 %v1143, %v1506
        %v1520 = vmul.f32 %v1131, %v1506
        %v1521 = vmul.f32 %v1144, %v1506
        %v1522 = vmul.f32 %v1132, %v1506
        %v1523 = vadd.f32 %v1487, %v1507
        %v1524 = vadd.f32 %v1488, %v1508
        %v1525 = vadd.f32 %v1489, %v1509
        %v1526 = vadd.f32 %v1490, %v1510
        %v1527 = vadd.f32 %v1491, %v1511
        %v1528 = vadd.f32 %v1492, %v1512
        %v1529 = vadd.f32 %v1493, %v1513
        %v1530 = vadd.f32 %v1494, %v1514
        %v1531 = vadd.f32 %v1495, %v1515
        %v1532 = vadd.f32 %v1496, %v1516
        %v1533 = vadd.f32 %v1497, %v1517
        %v1534 = vadd.f32 %v1498, %v1518
        %v1535 = vadd.f32 %v1499, %v1519
        %v1536 = vadd.f32 %v1500, %v1520
        %v1537 = vadd.f32 %v1501, %v1521
        %v1538 = vadd.f32 %v1502, %v1522
        %v1539 = vlaneseq
        %v1540 = vshrl.u32 %v1539, 7
        %v1541 = vsub.s32 1, %v1540
        %v1542 = vrot.slane %v923, %v1541
        %v1543 = vmul.f32 %v1198, %v1542
        %v1544 = vmul.f32 %v1186, %v1542
        %v1545 = vmul.f32 %v1199, %v1542
        %v1546 = vmul.f32 %v1187, %v1542
        %v1547 = vmul.f32 %v1200, %v1542
        %v1548 = vmul.f32 %v1188, %v1542
        %v1549 = vmul.f32 %v1201, %v1542
        %v1550 = vmul.f32 %v1189, %v1542
        %v1551 = vmul.f32 %v1202, %v1542
        %v1552 = vmul.f32 %v1190, %v1542
        %v1553 = vmul.f32 %v1203, %v1542
        %v1554 = vmul.f32 %v1191, %v1542
        %v1555 = vmul.f32 %v1204, %v1542
        %v1556 = vmul.f32 %v1192, %v1542
        %v1557 = vmul.f32 %v1205, %v1542
        %v1558 = vmul.f32 %v1193, %v1542
        %v1559 = vadd.f32 %v1523, %v1543
        %v1560 = vadd.f32 %v1524, %v1544
        %v1561 = vadd.f32 %v1525, %v1545
        %v1562 = vadd.f32 %v1526, %v1546
        %v1563 = vadd.f32 %v1527, %v1547
        %v1564 = vadd.f32 %v1528, %v1548
        %v1565 = vadd.f32 %v1529, %v1549
        %v1566 = vadd.f32 %v1530, %v1550
        %v1567 = vadd.f32 %v1531, %v1551
        %v1568 = vadd.f32 %v1532, %v1552
        %v1569 = vadd.f32 %v1533, %v1553
        %v1570 = vadd.f32 %v1534, %v1554
        %v1571 = vadd.f32 %v1535, %v1555
        %v1572 = vadd.f32 %v1536, %v1556
        %v1573 = vadd.f32 %v1537, %v1557
        %v1574 = vadd.f32 %v1538, %v1558
        %v1575 = vlaneseq
        %v1576 = vshrl.u32 %v1575, 7
        %v1577 = vsub.s32 2, %v1576
        %v1578 = vrot.slane %v923, %v1577
        %v1579 = vmul.f32 %v933, %v1578
        %v1580 = vmul.f32 %v934, %v1578
        %v1581 = vmul.f32 %v936, %v1578
        %v1582 = vmul.f32 %v937, %v1578
        %v1583 = vmul.f32 %v939, %v1578
        %v1584 = vmul.f32 %v940, %v1578
        %v1585 = vmul.f32 %v942, %v1578
        %v1586 = vmul.f32 %v943, %v1578
        %v1587 = vmul.f32 %v945, %v1578
        %v1588 = vmul.f32 %v946, %v1578
        %v1589 = vmul.f32 %v948, %v1578
        %v1590 = vmul.f32 %v949, %v1578
        %v1591 = vmul.f32 %v951, %v1578
        %v1592 = vmul.f32 %v952, %v1578
        %v1593 = vmul.f32 %v954, %v1578
        %v1594 = vmul.f32 %v955, %v1578
        %v1595 = vadd.f32 %v1559, %v1579
        %v1596 = vadd.f32 %v1560, %v1580
        %v1597 = vadd.f32 %v1561, %v1581
        %v1598 = vadd.f32 %v1562, %v1582
        %v1599 = vadd.f32 %v1563, %v1583
        %v1600 = vadd.f32 %v1564, %v1584
        %v1601 = vadd.f32 %v1565, %v1585
        %v1602 = vadd.f32 %v1566, %v1586
        %v1603 = vadd.f32 %v1567, %v1587
        %v1604 = vadd.f32 %v1568, %v1588
        %v1605 = vadd.f32 %v1569, %v1589
        %v1606 = vadd.f32 %v1570, %v1590
        %v1607 = vadd.f32 %v1571, %v1591
        %v1608 = vadd.f32 %v1572, %v1592
        %v1609 = vadd.f32 %v1573, %v1593
        %v1610 = vadd.f32 %v1574, %v1594
        %v1611 = vlaneseq
        %v1612 = vshrl.u32 %v1611, 7
        %v1613 = vsub.s32 3, %v1612
        %v1614 = vrot.slane %v923, %v1613
        %v1615 = vmul.f32 %v1016, %v1614
        %v1616 = vmul.f32 %v1004, %v1614
        %v1617 = vmul.f32 %v1017, %v1614
        %v1618 = vmul.f32 %v1005, %v1614
        %v1619 = vmul.f32 %v1018, %v1614
        %v1620 = vmul.f32 %v1006, %v1614
        %v1621 = vmul.f32 %v1019, %v1614
        %v1622 = vmul.f32 %v1007, %v1614
        %v1623 = vmul.f32 %v1020, %v1614
        %v1624 = vmul.f32 %v1008, %v1614
        %v1625 = vmul.f32 %v1021, %v1614
        %v1626 = vmul.f32 %v1009, %v1614
        %v1627 = vmul.f32 %v1022, %v1614
        %v1628 = vmul.f32 %v1010, %v1614
        %v1629 = vmul.f32 %v1023, %v1614
        %v1630 = vmul.f32 %v1011, %v1614
        %v1631 = vadd.f32 %v1595, %v1615
        %v1632 = vadd.f32 %v1596, %v1616
        %v1633 = vadd.f32 %v1597, %v1617
        %v1634 = vadd.f32 %v1598, %v1618
        %v1635 = vadd.f32 %v1599, %v1619
        %v1636 = vadd.f32 %v1600, %v1620
        %v1637 = vadd.f32 %v1601, %v1621
        %v1638 = vadd.f32 %v1602, %v1622
        %v1639 = vadd.f32 %v1603, %v1623
        %v1640 = vadd.f32 %v1604, %v1624
        %v1641 = vadd.f32 %v1605, %v1625
        %v1642 = vadd.f32 %v1606, %v1626
        %v1643 = vadd.f32 %v1607, %v1627
        %v1644 = vadd.f32 %v1608, %v1628
        %v1645 = vadd.f32 %v1609, %v1629
        %v1646 = vadd.f32 %v1610, %v1630
        %v1647 = vlaneseq
        %v1648 = vshrl.u32 %v1647, 7
        %v1649 = vsub.s32 4, %v1648
        %v1650 = vrot.slane %v923, %v1649
        %v1651 = vmul.f32 %v1077, %v1650
        %v1652 = vmul.f32 %v1065, %v1650
        %v1653 = vmul.f32 %v1078, %v1650
        %v1654 = vmul.f32 %v1066, %v1650
        %v1655 = vmul.f32 %v1079, %v1650
        %v1656 = vmul.f32 %v1067, %v1650
        %v1657 = vmul.f32 %v1080, %v1650
        %v1658 = vmul.f32 %v1068, %v1650
        %v1659 = vmul.f32 %v1081, %v1650
        %v1660 = vmul.f32 %v1069, %v1650
        %v1661 = vmul.f32 %v1082, %v1650
        %v1662 = vmul.f32 %v1070, %v1650
        %v1663 = vmul.f32 %v1083, %v1650
        %v1664 = vmul.f32 %v1071, %v1650
        %v1665 = vmul.f32 %v1084, %v1650
        %v1666 = vmul.f32 %v1072, %v1650
        %v1667 = vadd.f32 %v1631, %v1651
        %v1668 = vadd.f32 %v1632, %v1652
        %v1669 = vadd.f32 %v1633, %v1653
        %v1670 = vadd.f32 %v1634, %v1654
        %v1671 = vadd.f32 %v1635, %v1655
        %v1672 = vadd.f32 %v1636, %v1656
        %v1673 = vadd.f32 %v1637, %v1657
        %v1674 = vadd.f32 %v1638, %v1658
        %v1675 = vadd.f32 %v1639, %v1659
        %v1676 = vadd.f32 %v1640, %v1660
        %v1677 = vadd.f32 %v1641, %v1661
        %v1678 = vadd.f32 %v1642, %v1662
        %v1679 = vadd.f32 %v1643, %v1663
        %v1680 = vadd.f32 %v1644, %v1664
        %v1681 = vadd.f32 %v1645, %v1665
        %v1682 = vadd.f32 %v1646, %v1666
        %v1683 = vlaneseq
        %v1684 = vshrl.u32 %v1683, 7
        %v1685 = vsub.s32 5, %v1684
        %v1686 = vrot.slane %v923, %v1685
        %v1687 = vmul.f32 %v1138, %v1686
        %v1688 = vmul.f32 %v1126, %v1686
        %v1689 = vmul.f32 %v1139, %v1686
        %v1690 = vmul.f32 %v1127, %v1686
        %v1691 = vmul.f32 %v1140, %v1686
        %v1692 = vmul.f32 %v1128, %v1686
        %v1693 = vmul.f32 %v1141, %v1686
        %v1694 = vmul.f32 %v1129, %v1686
        %v1695 = vmul.f32 %v1142, %v1686
        %v1696 = vmul.f32 %v1130, %v1686
        %v1697 = vmul.f32 %v1143, %v1686
        %v1698 = vmul.f32 %v1131, %v1686
        %v1699 = vmul.f32 %v1144, %v1686
        %v1700 = vmul.f32 %v1132, %v1686
        %v1701 = vmul.f32 %v1145, %v1686
        %v1702 = vmul.f32 %v1133, %v1686
        %v1703 = vadd.f32 %v1667, %v1687
        %v1704 = vadd.f32 %v1668, %v1688
        %v1705 = vadd.f32 %v1669, %v1689
        %v1706 = vadd.f32 %v1670, %v1690
        %v1707 = vadd.f32 %v1671, %v1691
        %v1708 = vadd.f32 %v1672, %v1692
        %v1709 = vadd.f32 %v1673, %v1693
        %v1710 = vadd.f32 %v1674, %v1694
        %v1711 = vadd.f32 %v1675, %v1695
        %v1712 = vadd.f32 %v1676, %v1696
        %v1713 = vadd.f32 %v1677, %v1697
        %v1714 = vadd.f32 %v1678, %v1698
        %v1715 = vadd.f32 %v1679, %v1699
        %v1716 = vadd.f32 %v1680, %v1700
        %v1717 = vadd.f32 %v1681, %v1701
        %v1718 = vadd.f32 %v1682, %v1702
        %v1719 = vlaneseq
        %v1720 = vshrl.u32 %v1719, 7
        %v1721 = vsub.s32 6, %v1720
        %v1722 = vrot.slane %v923, %v1721
        %v1723 = vmul.f32 %v1199, %v1722
        %v1724 = vmul.f32 %v1187, %v1722
        %v1725 = vmul.f32 %v1200, %v1722
        %v1726 = vmul.f32 %v1188, %v1722
        %v1727 = vmul.f32 %v1201, %v1722
        %v1728 = vmul.f32 %v1189, %v1722
        %v1729 = vmul.f32 %v1202, %v1722
        %v1730 = vmul.f32 %v1190, %v1722
        %v1731 = vmul.f32 %v1203, %v1722
        %v1732 = vmul.f32 %v1191, %v1722
        %v1733 = vmul.f32 %v1204, %v1722
        %v1734 = vmul.f32 %v1192, %v1722
        %v1735 = vmul.f32 %v1205, %v1722
        %v1736 = vmul.f32 %v1193, %v1722
        %v1737 = vmul.f32 %v1206, %v1722
        %v1738 = vmul.f32 %v1194, %v1722
        %v1739 = vadd.f32 %v1703, %v1723
        %v1740 = vadd.f32 %v1704, %v1724
        %v1741 = vadd.f32 %v1705, %v1725
        %v1742 = vadd.f32 %v1706, %v1726
        %v1743 = vadd.f32 %v1707, %v1727
        %v1744 = vadd.f32 %v1708, %v1728
        %v1745 = vadd.f32 %v1709, %v1729
        %v1746 = vadd.f32 %v1710, %v1730
        %v1747 = vadd.f32 %v1711, %v1731
        %v1748 = vadd.f32 %v1712, %v1732
        %v1749 = vadd.f32 %v1713, %v1733
        %v1750 = vadd.f32 %v1714, %v1734
        %v1751 = vadd.f32 %v1715, %v1735
        %v1752 = vadd.f32 %v1716, %v1736
        %v1753 = vadd.f32 %v1717, %v1737
        %v1754 = vadd.f32 %v1718, %v1738
        %v1755 = vlaneseq
        %v1756 = vshrl.u32 %v1755, 7
        %v1757 = vsub.s32 7, %v1756
        %v1758 = vrot.slane %v923, %v1757
        %v1759 = vmul.f32 %v936, %v1758
        %v1760 = vmul.f32 %v937, %v1758
        %v1761 = vmul.f32 %v939, %v1758
        %v1762 = vmul.f32 %v940, %v1758
        %v1763 = vmul.f32 %v942, %v1758
        %v1764 = vmul.f32 %v943, %v1758
        %v1765 = vmul.f32 %v945, %v1758
        %v1766 = vmul.f32 %v946, %v1758
        %v1767 = vmul.f32 %v948, %v1758
        %v1768 = vmul.f32 %v949, %v1758
        %v1769 = vmul.f32 %v951, %v1758
        %v1770 = vmul.f32 %v952, %v1758
        %v1771 = vmul.f32 %v954, %v1758
        %v1772 = vmul.f32 %v955, %v1758
        %v1773 = vmul.f32 %v957, %v1758
        %v1774 = vmul.f32 %v958, %v1758
        %v1775 = vadd.f32 %v1739, %v1759
        %v1776 = vadd.f32 %v1740, %v1760
        %v1777 = vadd.f32 %v1741, %v1761
        %v1778 = vadd.f32 %v1742, %v1762
        %v1779 = vadd.f32 %v1743, %v1763
        %v1780 = vadd.f32 %v1744, %v1764
        %v1781 = vadd.f32 %v1745, %v1765
        %v1782 = vadd.f32 %v1746, %v1766
        %v1783 = vadd.f32 %v1747, %v1767
        %v1784 = vadd.f32 %v1748, %v1768
        %v1785 = vadd.f32 %v1749, %v1769
        %v1786 = vadd.f32 %v1750, %v1770
        %v1787 = vadd.f32 %v1751, %v1771
        %v1788 = vadd.f32 %v1752, %v1772
        %v1789 = vadd.f32 %v1753, %v1773
        %v1790 = vadd.f32 %v1754, %v1774
        %v1791 = vlaneseq
        %v1792 = vshrl.u32 %v1791, 7
        %v1793 = vsub.s32 0, %v1792
        %v1794 = vrot.slane %v924, %v1793
        %v1795 = vmul.f32 %v1017, %v1794
        %v1796 = vmul.f32 %v1005, %v1794
        %v1797 = vmul.f32 %v1018, %v1794
        %v1798 = vmul.f32 %v1006, %v1794
        %v1799 = vmul.f32 %v1019, %v1794
        %v1800 = vmul.f32 %v1007, %v1794
        %v1801 = vmul.f32 %v1020, %v1794
        %v1802 = vmul.f32 %v1008, %v1794
        %v1803 = vmul.f32 %v1021, %v1794
        %v1804 = vmul.f32 %v1009, %v1794
        %v1805 = vmul.f32 %v1022, %v1794
        %v1806 = vmul.f32 %v1010, %v1794
        %v1807 = vmul.f32 %v1023, %v1794
        %v1808 = vmul.f32 %v1011, %v1794
        %v1809 = vmul.f32 %v1024, %v1794
        %v1810 = vmul.f32 %v1012, %v1794
        %v1811 = vadd.f32 %v1775, %v1795
        %v1812 = vadd.f32 %v1776, %v1796
        %v1813 = vadd.f32 %v1777, %v1797
        %v1814 = vadd.f32 %v1778, %v1798
        %v1815 = vadd.f32 %v1779, %v1799
        %v1816 = vadd.f32 %v1780, %v1800
        %v1817 = vadd.f32 %v1781, %v1801
        %v1818 = vadd.f32 %v1782, %v1802
        %v1819 = vadd.f32 %v1783, %v1803
        %v1820 = vadd.f32 %v1784, %v1804
        %v1821 = vadd.f32 %v1785, %v1805
        %v1822 = vadd.f32 %v1786, %v1806
        %v1823 = vadd.f32 %v1787, %v1807
        %v1824 = vadd.f32 %v1788, %v1808
        %v1825 = vadd.f32 %v1789, %v1809
        %v1826 = vadd.f32 %v1790, %v1810
        %v1827 = vlaneseq
        %v1828 = vshrl.u32 %v1827, 7
        %v1829 = vsub.s32 1, %v1828
        %v1830 = vrot.slane %v924, %v1829
        %v1831 = vmul.f32 %v1078, %v1830
        %v1832 = vmul.f32 %v1066, %v1830
        %v1833 = vmul.f32 %v1079, %v1830
        %v1834 = vmul.f32 %v1067, %v1830
        %v1835 = vmul.f32 %v1080, %v1830
        %v1836 = vmul.f32 %v1068, %v1830
        %v1837 = vmul.f32 %v1081, %v1830
        %v1838 = vmul.f32 %v1069, %v1830
        %v1839 = vmul.f32 %v1082, %v1830
        %v1840 = vmul.f32 %v1070, %v1830
        %v1841 = vmul.f32 %v1083, %v1830
        %v1842 = vmul.f32 %v1071, %v1830
        %v1843 = vmul.f32 %v1084, %v1830
        %v1844 = vmul.f32 %v1072, %v1830
        %v1845 = vmul.f32 %v1085, %v1830
        %v1846 = vmul.f32 %v1073, %v1830
        %v1847 = vadd.f32 %v1811, %v1831
        %v1848 = vadd.f32 %v1812, %v1832
        %v1849 = vadd.f32 %v1813, %v1833
        %v1850 = vadd.f32 %v1814, %v1834
        %v1851 = vadd.f32 %v1815, %v1835
        %v1852 = vadd.f32 %v1816, %v1836
        %v1853 = vadd.f32 %v1817, %v1837
        %v1854 = vadd.f32 %v1818, %v1838
        %v1855 = vadd.f32 %v1819, %v1839
        %v1856 = vadd.f32 %v1820, %v1840
        %v1857 = vadd.f32 %v1821, %v1841
        %v1858 = vadd.f32 %v1822, %v1842
        %v1859 = vadd.f32 %v1823, %v1843
        %v1860 = vadd.f32 %v1824, %v1844
        %v1861 = vadd.f32 %v1825, %v1845
        %v1862 = vadd.f32 %v1826, %v1846
        %v1863 = vlaneseq
        %v1864 = vshrl.u32 %v1863, 7
        %v1865 = vsub.s32 2, %v1864
        %v1866 = vrot.slane %v924, %v1865
        %v1867 = vmul.f32 %v1139, %v1866
        %v1868 = vmul.f32 %v1127, %v1866
        %v1869 = vmul.f32 %v1140, %v1866
        %v1870 = vmul.f32 %v1128, %v1866
        %v1871 = vmul.f32 %v1141, %v1866
        %v1872 = vmul.f32 %v1129, %v1866
        %v1873 = vmul.f32 %v1142, %v1866
        %v1874 = vmul.f32 %v1130, %v1866
        %v1875 = vmul.f32 %v1143, %v1866
        %v1876 = vmul.f32 %v1131, %v1866
        %v1877 = vmul.f32 %v1144, %v1866
        %v1878 = vmul.f32 %v1132, %v1866
        %v1879 = vmul.f32 %v1145, %v1866
        %v1880 = vmul.f32 %v1133, %v1866
        %v1881 = vmul.f32 %v1146, %v1866
        %v1882 = vmul.f32 %v1134, %v1866
        %v1883 = vadd.f32 %v1847, %v1867
        %v1884 = vadd.f32 %v1848, %v1868
        %v1885 = vadd.f32 %v1849, %v1869
        %v1886 = vadd.f32 %v1850, %v1870
        %v1887 = vadd.f32 %v1851, %v1871
        %v1888 = vadd.f32 %v1852, %v1872
        %v1889 = vadd.f32 %v1853, %v1873
        %v1890 = vadd.f32 %v1854, %v1874
        %v1891 = vadd.f32 %v1855, %v1875
        %v1892 = vadd.f32 %v1856, %v1876
        %v1893 = vadd.f32 %v1857, %v1877
        %v1894 = vadd.f32 %v1858, %v1878
        %v1895 = vadd.f32 %v1859, %v1879
        %v1896 = vadd.f32 %v1860, %v1880
        %v1897 = vadd.f32 %v1861, %v1881
        %v1898 = vadd.f32 %v1862, %v1882
        %v1899 = vlaneseq
        %v1900 = vshrl.u32 %v1899, 7
        %v1901 = vsub.s32 3, %v1900
        %v1902 = vrot.slane %v924, %v1901
        %v1903 = vmul.f32 %v1200, %v1902
        %v1904 = vmul.f32 %v1188, %v1902
        %v1905 = vmul.f32 %v1201, %v1902
        %v1906 = vmul.f32 %v1189, %v1902
        %v1907 = vmul.f32 %v1202, %v1902
        %v1908 = vmul.f32 %v1190, %v1902
        %v1909 = vmul.f32 %v1203, %v1902
        %v1910 = vmul.f32 %v1191, %v1902
        %v1911 = vmul.f32 %v1204, %v1902
        %v1912 = vmul.f32 %v1192, %v1902
        %v1913 = vmul.f32 %v1205, %v1902
        %v1914 = vmul.f32 %v1193, %v1902
        %v1915 = vmul.f32 %v1206, %v1902
        %v1916 = vmul.f32 %v1194, %v1902
        %v1917 = vmul.f32 %v1207, %v1902
        %v1918 = vmul.f32 %v1195, %v1902
        %v1919 = vadd.f32 %v1883, %v1903
        %v1920 = vadd.f32 %v1884, %v1904
        %v1921 = vadd.f32 %v1885, %v1905
        %v1922 = vadd.f32 %v1886, %v1906
        %v1923 = vadd.f32 %v1887, %v1907
        %v1924 = vadd.f32 %v1888, %v1908
        %v1925 = vadd.f32 %v1889, %v1909
        %v1926 = vadd.f32 %v1890, %v1910
        %v1927 = vadd.f32 %v1891, %v1911
        %v1928 = vadd.f32 %v1892, %v1912
        %v1929 = vadd.f32 %v1893, %v1913
        %v1930 = vadd.f32 %v1894, %v1914
        %v1931 = vadd.f32 %v1895, %v1915
        %v1932 = vadd.f32 %v1896, %v1916
        %v1933 = vadd.f32 %v1897, %v1917
        %v1934 = vadd.f32 %v1898, %v1918
        %v1935 = vlaneseq
        %v1936 = vshrl.u32 %v1935, 7
        %v1937 = vsub.s32 4, %v1936
        %v1938 = vrot.slane %v924, %v1937
        %v1939 = vmul.f32 %v939, %v1938
        %v1940 = vmul.f32 %v940, %v1938
        %v1941 = vmul.f32 %v942, %v1938
        %v1942 = vmul.f32 %v943, %v1938
        %v1943 = vmul.f32 %v945, %v1938
        %v1944 = vmul.f32 %v946, %v1938
        %v1945 = vmul.f32 %v948, %v1938
        %v1946 = vmul.f32 %v949, %v1938
        %v1947 = vmul.f32 %v951, %v1938
        %v1948 = vmul.f32 %v952, %v1938
        %v1949 = vmul.f32 %v954, %v1938
        %v1950 = vmul.f32 %v955, %v1938
        %v1951 = vmul.f32 %v957, %v1938
        %v1952 = vmul.f32 %v958, %v1938
        %v1953 = vmul.f32 %v960, %v1938
        %v1954 = vmul.f32 %v961, %v1938
        %v1955 = vadd.f32 %v1919, %v1939
        %v1956 = vadd.f32 %v1920, %v1940
        %v1957 = vadd.f32 %v1921, %v1941
        %v1958 = vadd.f32 %v1922, %v1942
        %v1959 = vadd.f32 %v1923, %v1943
        %v1960 = vadd.f32 %v1924, %v1944
        %v1961 = vadd.f32 %v1925, %v1945
        %v1962 = vadd.f32 %v1926, %v1946
        %v1963 = vadd.f32 %v1927, %v1947
        %v1964 = vadd.f32 %v1928, %v1948
        %v1965 = vadd.f32 %v1929, %v1949
        %v1966 = vadd.f32 %v1930, %v1950
        %v1967 = vadd.f32 %v1931, %v1951
        %v1968 = vadd.f32 %v1932, %v1952
        %v1969 = vadd.f32 %v1933, %v1953
        %v1970 = vadd.f32 %v1934, %v1954
        %v1971 = vlaneseq
        %v1972 = vshrl.u32 %v1971, 7
        %v1973 = vsub.s32 5, %v1972
        %v1974 = vrot.slane %v924, %v1973
        %v1975 = vmul.f32 %v1018, %v1974
        %v1976 = vmul.f32 %v1006, %v1974
        %v1977 = vmul.f32 %v1019, %v1974
        %v1978 = vmul.f32 %v1007, %v1974
        %v1979 = vmul.f32 %v1020, %v1974
        %v1980 = vmul.f32 %v1008, %v1974
        %v1981 = vmul.f32 %v1021, %v1974
        %v1982 = vmul.f32 %v1009, %v1974
        %v1983 = vmul.f32 %v1022, %v1974
        %v1984 = vmul.f32 %v1010, %v1974
        %v1985 = vmul.f32 %v1023, %v1974
        %v1986 = vmul.f32 %v1011, %v1974
        %v1987 = vmul.f32 %v1024, %v1974
        %v1988 = vmul.f32 %v1012, %v1974
        %v1989 = vmul.f32 %v1025, %v1974
        %v1990 = vmul.f32 %v1013, %v1974
        %v1991 = vadd.f32 %v1955, %v1975
        %v1992 = vadd.f32 %v1956, %v1976
        %v1993 = vadd.f32 %v1957, %v1977
        %v1994 = vadd.f32 %v1958, %v1978
        %v1995 = vadd.f32 %v1959, %v1979
        %v1996 = vadd.f32 %v1960, %v1980
        %v1997 = vadd.f32 %v1961, %v1981
        %v1998 = vadd.f32 %v1962, %v1982
        %v1999 = vadd.f32 %v1963, %v1983
        %v2000 = vadd.f32 %v1964, %v1984
        %v2001 = vadd.f32 %v1965, %v1985
        %v2002 = vadd.f32 %v1966, %v1986
        %v2003 = vadd.f32 %v1967, %v1987
        %v2004 = vadd.f32 %v1968, %v1988
        %v2005 = vadd.f32 %v1969, %v1989
        %v2006 = vadd.f32 %v1970, %v1990
        %v2007 = vlaneseq
        %v2008 = vshrl.u32 %v2007, 7
        %v2009 = vsub.s32 6, %v2008
        %v2010 = vrot.slane %v924, %v2009
        %v2011 = vmul.f32 %v1079, %v2010
        %v2012 = vmul.f32 %v1067, %v2010
        %v2013 = vmul.f32 %v1080, %v2010
        %v2014 = vmul.f32 %v1068, %v2010
        %v2015 = vmul.f32 %v1081, %v2010
        %v2016 = vmul.f32 %v1069, %v2010
        %v2017 = vmul.f32 %v1082, %v2010
        %v2018 = vmul.f32 %v1070, %v2010
        %v2019 = vmul.f32 %v1083, %v2010
        %v2020 = vmul.f32 %v1071, %v2010
        %v2021 = vmul.f32 %v1084, %v2010
        %v2022 = vmul.f32 %v1072, %v2010
        %v2023 = vmul.f32 %v1085, %v2010
        %v2024 = vmul.f32 %v1073, %v2010
        %v2025 = vmul.f32 %v1086, %v2010
        %v2026 = vmul.f32 %v1074, %v2010
        %v2027 = vadd.f32 %v1991, %v2011
        %v2028 = vadd.f32 %v1992, %v2012
        %v2029 = vadd.f32 %v1993, %v2013
        %v2030 = vadd.f32 %v1994, %v2014
        %v2031 = vadd.f32 %v1995, %v2015
        %v2032 = vadd.f32 %v1996, %v2016
        %v2033 = vadd.f32 %v1997, %v2017
        %v2034 = vadd.f32 %v1998, %v2018
        %v2035 = vadd.f32 %v1999, %v2019
        %v2036 = vadd.f32 %v2000, %v2020
        %v2037 = vadd.f32 %v2001, %v2021
        %v2038 = vadd.f32 %v2002, %v2022
        %v2039 = vadd.f32 %v2003, %v2023
        %v2040 = vadd.f32 %v2004, %v2024
        %v2041 = vadd.f32 %v2005, %v2025
        %v2042 = vadd.f32 %v2006, %v2026
        %v2043 = vlaneseq
        %v2044 = vshrl.u32 %v2043, 7
        %v2045 = vsub.s32 7, %v2044
        %v2046 = vrot.slane %v924, %v2045
        %v2047 = vmul.f32 %v1140, %v2046
        %v2048 = vmul.f32 %v1128, %v2046
        %v2049 = vmul.f32 %v1141, %v2046
        %v2050 = vmul.f32 %v1129, %v2046
        %v2051 = vmul.f32 %v1142, %v2046
        %v2052 = vmul.f32 %v1130, %v2046
        %v2053 = vmul.f32 %v1143, %v2046
        %v2054 = vmul.f32 %v1131, %v2046
        %v2055 = vmul.f32 %v1144, %v2046
        %v2056 = vmul.f32 %v1132, %v2046
        %v2057 = vmul.f32 %v1145, %v2046
        %v2058 = vmul.f32 %v1133, %v2046
        %v2059 = vmul.f32 %v1146, %v2046
        %v2060 = vmul.f32 %v1134, %v2046
        %v2061 = vmul.f32 %v1147, %v2046
        %v2062 = vmul.f32 %v1135, %v2046
        %v2063 = vadd.f32 %v2027, %v2047
        %v2064 = vadd.f32 %v2028, %v2048
        %v2065 = vadd.f32 %v2029, %v2049
        %v2066 = vadd.f32 %v2030, %v2050
        %v2067 = vadd.f32 %v2031, %v2051
        %v2068 = vadd.f32 %v2032, %v2052
        %v2069 = vadd.f32 %v2033, %v2053
        %v2070 = vadd.f32 %v2034, %v2054
        %v2071 = vadd.f32 %v2035, %v2055
        %v2072 = vadd.f32 %v2036, %v2056
        %v2073 = vadd.f32 %v2037, %v2057
        %v2074 = vadd.f32 %v2038, %v2058
        %v2075 = vadd.f32 %v2039, %v2059
        %v2076 = vadd.f32 %v2040, %v2060
        %v2077 = vadd.f32 %v2041, %v2061
        %v2078 = vadd.f32 %v2042, %v2062
        %v2079 = vlaneseq
        %v2080 = vshrl.u32 %v2079, 7
        %v2081 = vsub.s32 0, %v2080
        %v2082 = vrot.slane %v925, %v2081
        %v2083 = vmul.f32 %v1201, %v2082
        %v2084 = vmul.f32 %v1189, %v2082
        %v2085 = vmul.f32 %v1202, %v2082
        %v2086 = vmul.f32 %v1190, %v2082
        %v2087 = vmul.f32 %v1203, %v2082
        %v2088 = vmul.f32 %v1191, %v2082
        %v2089 = vmul.f32 %v1204, %v2082
        %v2090 = vmul.f32 %v1192, %v2082
        %v2091 = vmul.f32 %v1205, %v2082
        %v2092 = vmul.f32 %v1193, %v2082
        %v2093 = vmul.f32 %v1206, %v2082
        %v2094 = vmul.f32 %v1194, %v2082
        %v2095 = vmul.f32 %v1207, %v2082
        %v2096 = vmul.f32 %v1195, %v2082
        %v2097 = vmul.f32 %v1208, %v2082
        %v2098 = vmul.f32 %v1196, %v2082
        %v2099 = vadd.f32 %v2063, %v2083
        %v2100 = vadd.f32 %v2064, %v2084
        %v2101 = vadd.f32 %v2065, %v2085
        %v2102 = vadd.f32 %v2066, %v2086
        %v2103 = vadd.f32 %v2067, %v2087
        %v2104 = vadd.f32 %v2068, %v2088
        %v2105 = vadd.f32 %v2069, %v2089
        %v2106 = vadd.f32 %v2070, %v2090
        %v2107 = vadd.f32 %v2071, %v2091
        %v2108 = vadd.f32 %v2072, %v2092
        %v2109 = vadd.f32 %v2073, %v2093
        %v2110 = vadd.f32 %v2074, %v2094
        %v2111 = vadd.f32 %v2075, %v2095
        %v2112 = vadd.f32 %v2076, %v2096
        %v2113 = vadd.f32 %v2077, %v2097
        %v2114 = vadd.f32 %v2078, %v2098
        %v2115 = vxor.u32 %v2099, 2147483648
        %v2116 = vxor.u32 %v2100, 2147483648
        %v2117 = vxor.u32 %v2101, 2147483648
        %v2118 = vxor.u32 %v2102, 2147483648
        %v2119 = vxor.u32 %v2103, 2147483648
        %v2120 = vxor.u32 %v2104, 2147483648
        %v2121 = vxor.u32 %v2105, 2147483648
        %v2122 = vxor.u32 %v2106, 2147483648
        %v2123 = vxor.u32 %v2107, 2147483648
        %v2124 = vxor.u32 %v2108, 2147483648
        %v2125 = vxor.u32 %v2109, 2147483648
        %v2126 = vxor.u32 %v2110, 2147483648
        %v2127 = vxor.u32 %v2111, 2147483648
        %v2128 = vxor.u32 %v2112, 2147483648
        %v2129 = vxor.u32 %v2113, 2147483648
        %v2130 = vxor.u32 %v2114, 2147483648
        %v2131 = vmul.f32 %v2115, 1.442695
        %v2132 = vpow.pop %v2131
        %v2133 = vmul.f32 %v2116, 1.442695
        %v2134 = vpow.pop %v2133
        %v2135 = vmul.f32 %v2117, 1.442695
        %v2136 = vpow.pop %v2135
        %v2137 = vmul.f32 %v2118, 1.442695
        %v2138 = vpow.pop %v2137
        %v2139 = vmul.f32 %v2119, 1.442695
        %v2140 = vpow.pop %v2139
        %v2141 = vmul.f32 %v2120, 1.442695
        %v2142 = vpow.pop %v2141
        %v2143 = vmul.f32 %v2121, 1.442695
        %v2144 = vpow.pop %v2143
        %v2145 = vmul.f32 %v2122, 1.442695
        %v2146 = vpow.pop %v2145
        %v2147 = vmul.f32 %v2123, 1.442695
        %v2148 = vpow.pop %v2147
        %v2149 = vmul.f32 %v2124, 1.442695
        %v2150 = vpow.pop %v2149
        %v2151 = vmul.f32 %v2125, 1.442695
        %v2152 = vpow.pop %v2151
        %v2153 = vmul.f32 %v2126, 1.442695
        %v2154 = vpow.pop %v2153
        %v2155 = vmul.f32 %v2127, 1.442695
        %v2156 = vpow.pop %v2155
        %v2157 = vmul.f32 %v2128, 1.442695
        %v2158 = vpow.pop %v2157
        %v2159 = vmul.f32 %v2129, 1.442695
        %v2160 = vpow.pop %v2159
        %v2161 = vmul.f32 %v2130, 1.442695
        %v2162 = vpow.pop %v2161
        %v2163 = vadd.f32 %v2132, 1.0
        %v2164 = vadd.f32 %v2134, 1.0
        %v2165 = vadd.f32 %v2136, 1.0
        %v2166 = vadd.f32 %v2138, 1.0
        %v2167 = vadd.f32 %v2140, 1.0
        %v2168 = vadd.f32 %v2142, 1.0
        %v2169 = vadd.f32 %v2144, 1.0
        %v2170 = vadd.f32 %v2146, 1.0
        %v2171 = vadd.f32 %v2148, 1.0
        %v2172 = vadd.f32 %v2150, 1.0
        %v2173 = vadd.f32 %v2152, 1.0
        %v2174 = vadd.f32 %v2154, 1.0
        %v2175 = vadd.f32 %v2156, 1.0
        %v2176 = vadd.f32 %v2158, 1.0
        %v2177 = vadd.f32 %v2160, 1.0
        %v2178 = vadd.f32 %v2162, 1.0
        %v2179 = vrcp.pop %v2163
        %v2180 = vmul.f32 1.0, %v2179
        %v2181 = vrcp.pop %v2164
        %v2182 = vmul.f32 1.0, %v2181
        %v2183 = vrcp.pop %v2165
        %v2184 = vmul.f32 1.0, %v2183
        %v2185 = vrcp.pop %v2166
        %v2186 = vmul.f32 1.0, %v2185
        %v2187 = vrcp.pop %v2167
        %v2188 = vmul.f32 1.0, %v2187
        %v2189 = vrcp.pop %v2168
        %v2190 = vmul.f32 1.0, %v2189
        %v2191 = vrcp.pop %v2169
        %v2192 = vmul.f32 1.0, %v2191
        %v2193 = vrcp.pop %v2170
        %v2194 = vmul.f32 1.0, %v2193
        %v2195 = vrcp.pop %v2171
        %v2196 = vmul.f32 1.0, %v2195
        %v2197 = vrcp.pop %v2172
        %v2198 = vmul.f32 1.0, %v2197
        %v2199 = vrcp.pop %v2173
        %v2200 = vmul.f32 1.0, %v2199
        %v2201 = vrcp.pop %v2174
        %v2202 = vmul.f32 1.0, %v2201
        %v2203 = vrcp.pop %v2175
        %v2204 = vmul.f32 1.0, %v2203
        %v2205 = vrcp.pop %v2176
        %v2206 = vmul.f32 1.0, %v2205
        %v2207 = vrcp.pop %v2177
        %v2208 = vmul.f32 1.0, %v2207
        %v2209 = vrcp.pop %v2178
        %v2210 = vmul.f32 1.0, %v2209
        %v2211 = vmul.f32 %v2099, %v2180
        %v2212 = vmul.f32 %v2100, %v2182
        %v2213 = vmul.f32 %v2101, %v2184
        %v2214 = vmul.f32 %v2102, %v2186
        %v2215 = vmul.f32 %v2103, %v2188
        %v2216 = vmul.f32 %v2104, %v2190
        %v2217 = vmul.f32 %v2105, %v2192
        %v2218 = vmul.f32 %v2106, %v2194
        %v2219 = vmul.f32 %v2107, %v2196
        %v2220 = vmul.f32 %v2108, %v2198
        %v2221 = vmul.f32 %v2109, %v2200
        %v2222 = vmul.f32 %v2110, %v2202
        %v2223 = vmul.f32 %v2111, %v2204
        %v2224 = vmul.f32 %v2112, %v2206
        %v2225 = vmul.f32 %v2113, %v2208
        %v2226 = vmul.f32 %v2114, %v2210
        %2243 = vrot.lane.b32.xlu0 %v2211, 4
        %v2244 = vpop.permute.xlu0 %2243
        %2245 = vrot.lane.b32.xlu0 %v2212, 4
        %v2246 = vpop.permute.xlu0 %2245
        %2247 = vrot.lane.b32.xlu0 %v2213, 4
        %v2248 = vpop.permute.xlu0 %2247
        %2249 = vrot.lane.b32.xlu0 %v2214, 4
        %v2250 = vpop.permute.xlu0 %2249
        %2251 = vrot.lane.b32.xlu0 %v2215, 4
        %v2252 = vpop.permute.xlu0 %2251
        %2253 = vrot.lane.b32.xlu0 %v2216, 4
        %v2254 = vpop.permute.xlu0 %2253
        %2255 = vrot.lane.b32.xlu0 %v2217, 4
        %v2256 = vpop.permute.xlu0 %2255
        %2257 = vrot.lane.b32.xlu0 %v2218, 4
        %v2258 = vpop.permute.xlu0 %2257
        %2259 = vrot.lane.b32.xlu0 %v2219, 4
        %v2260 = vpop.permute.xlu0 %2259
        %2261 = vrot.lane.b32.xlu0 %v2220, 4
        %v2262 = vpop.permute.xlu0 %2261
        %2263 = vrot.lane.b32.xlu0 %v2221, 4
        %v2264 = vpop.permute.xlu0 %2263
        %2265 = vrot.lane.b32.xlu0 %v2222, 4
        %v2266 = vpop.permute.xlu0 %2265
        %2267 = vrot.lane.b32.xlu0 %v2223, 4
        %v2268 = vpop.permute.xlu0 %2267
        %2269 = vrot.lane.b32.xlu0 %v2224, 4
        %v2270 = vpop.permute.xlu0 %2269
        %2271 = vrot.lane.b32.xlu0 %v2225, 4
        %v2272 = vpop.permute.xlu0 %2271
        %2273 = vrot.lane.b32.xlu0 %v2226, 4
        %v2274 = vpop.permute.xlu0 %2273
        %v2291 = vsel %vm345, %v852, %v2244
        %v2292 = vsel %vm345, %v853, %v2246
        %v2293 = vsel %vm345, %v854, %v2248
        %v2294 = vsel %vm345, %v855, %v2250
        %v2295 = vsel %vm345, %v856, %v2252
        %v2296 = vsel %vm345, %v857, %v2254
        %v2297 = vsel %vm345, %v858, %v2256
        %v2298 = vsel %vm345, %v859, %v2258
        %v2299 = vsel %vm345, %v860, %v2260
        %v2300 = vsel %vm345, %v861, %v2262
        %v2301 = vsel %vm345, %v862, %v2264
        %v2302 = vsel %vm345, %v863, %v2266
        %v2303 = vsel %vm345, %v864, %v2268
        %v2304 = vsel %vm345, %v865, %v2270
        %v2305 = vsel %vm345, %v866, %v2272
        %v2306 = vsel %vm345, %v867, %v2274
        %vm2307 = vcmask 64512
        %2308 = vst.msk [vmem:[%s308] sm:$0xff] %vm2307, %v2291
        %2309 = vst.msk [vmem:[%s308 + $0x8] sm:$0xff] %vm2307, %v2292
        %2310 = vst.msk [vmem:[%s308 + $0x10] sm:$0xff] %vm2307, %v2293
        %2311 = vst.msk [vmem:[%s308 + $0x18] sm:$0xff] %vm2307, %v2294
        %2312 = vst.msk [vmem:[%s308 + $0x20] sm:$0xff] %vm2307, %v2295
        %2313 = vst.msk [vmem:[%s308 + $0x28] sm:$0xff] %vm2307, %v2296
        %2314 = vst.msk [vmem:[%s308 + $0x30] sm:$0xff] %vm2307, %v2297
        %2315 = vst.msk [vmem:[%s308 + $0x38] sm:$0xff] %vm2307, %v2298
        %2316 = vst.msk [vmem:[%s308 + $0x40] sm:$0xff] %vm2307, %v2299
        %2317 = vst.msk [vmem:[%s308 + $0x48] sm:$0xff] %vm2307, %v2300
        %2318 = vst.msk [vmem:[%s308 + $0x50] sm:$0xff] %vm2307, %v2301
        %2319 = vst.msk [vmem:[%s308 + $0x58] sm:$0xff] %vm2307, %v2302
        %2320 = vst.msk [vmem:[%s308 + $0x60] sm:$0xff] %vm2307, %v2303
        %2321 = vst.msk [vmem:[%s308 + $0x68] sm:$0xff] %vm2307, %v2304
        %2322 = vst.msk [vmem:[%s308 + $0x70] sm:$0xff] %vm2307, %v2305
        %2323 = vst.msk [vmem:[%s308 + $0x78] sm:$0xff] %vm2307, %v2306
        %s2324 = sand.u32 %s156, 1
        %s2325 = scalar_lea.sflag [#allocation5], %s2324
        %s2326 = sand.u32 %s156, 1
        %s2327 = smul.addr %s2326, 128
        %s2328 = scalar_lea.vmem [#allocation12], %s2327
        // Predicated region
        $region61: #{tpu_custom_call.1} parent=39 // pred_check
          %p2329 = pneg %p166
        $region62: #{tpu_custom_call.1} parent=39 // pred_check_branch
          %2331 = sbr.rel (%p2329) target = $region64
        $region63: #{tpu_custom_call.1} parent=39 // pred_region
          %s2332 = smul.u32 8, %s29
          %s2334 = ssub.s32 2048, 2048
          %2335 = vsyncadd %s2325, %s2334
          %s2336 = smul.addr %s2332, 2
          %s2337 = smul.addr %s28, 32
          %s2338 = sadd.s32 %s2336, %s2337
          %s2339 = smul.addr %s2338, 128
          %s2340 = scalar_lea.hbm %s5, %s2339
          %s2341 = sshll.u32 %s2328, 4
          %s2342 = int_to_ptr.vmem [resolvable:$true] %s2341
          %2347 = dma.vmem_to_hbm [thread:$0]  %s2342, 2048, %s2340, %s2325, 128, 128, 8
        $region64: #{tpu_custom_call.1} parent=39 // pred_fallthru
          _
      $region40: #{tpu_custom_call.1} parent=5 // pred_fallthru
        _
      %p2348 = scmp.le.s32.totalorder 2, %s19
      // Predicated region
      $region65: #{tpu_custom_call.1} parent=5 // pred_check
        %p2349 = pneg %p2348
      $region66: #{tpu_custom_call.1} parent=5 // pred_check_branch
        %2351 = sbr.rel (%p2349) target = $region68
      $region67: #{tpu_custom_call.1} parent=5 // pred_region
        %s2352 = ssub.s32 %s19, 2
        // Predicated region
        $region69: #{tpu_custom_call.1} parent=67 // pred_check
          %p2353 = pneg %p172
        $region70: #{tpu_custom_call.1} parent=67 // pred_check_branch
          %2355 = sbr.rel (%p2353) target = $region72
        $region71: #{tpu_custom_call.1} parent=67 // pred_region
          %s2356 = sand.u32 %s157, 1
          %s2357 = scalar_lea.sflag [#allocation5], %s2356
          %s2358 = sand.u32 %s157, 1
          %s2359 = smul.addr %s2358, 128
          %s2360 = scalar_lea.vmem [#allocation12], %s2359
          %2361 = dma.done %s2357, 2048
        $region72: #{tpu_custom_call.1} parent=67 // pred_fallthru
          _
      $region68: #{tpu_custom_call.1} parent=5 // pred_fallthru
        _
    $region6: #{tpu_custom_call.1} parent=1 // loop_footer
      %s23 = sadd.s32 1, %s19
    $region7: #{tpu_custom_call.1} parent=1 // loop_footer_branch
      %18 = sbr.rel target = $region3
    $region8: #{tpu_custom_call.1} parent=1 // loop_exit
      _
    %2362 = vsyncpa [#allocation4], 1
    %s2363 = scalar_lea.sflag [#allocation4], 1
    %2364 = vsyncpa %s2363, 1
    %2365 = vsyncpa [#allocation7], 1
    %2366 = vsyncpa [#allocation10], 1
    %2367 = vsyncpa [#allocation5], 1
    %s2368 = scalar_lea.sflag [#allocation5], 1
    %2369 = vsyncpa %s2368, 1

</llo_original>
